<compile_context>
chip_gen: v7x
topology: tpu7x:2x2x1
jax: 0.10.0
libtpu: 0.0.40
codegen_flags: <defaults>
</compile_context>

<pallas_src>
import functools

import jax
import jax.numpy as jnp
from jax.experimental import pallas as pl
from jax.experimental.pallas import tpu as pltpu


# ----------------------------- Pallas kernel ------------------------------ #

def _matmul_bias_kernel(x_ref, w_ref, b_ref, o_ref, *, relu):
    # bf16 x bf16 on the MXU, f32 accumulation; bias + ReLU in f32 on the VPU.
    acc = jnp.dot(x_ref[...], w_ref[...], preferred_element_type=jnp.float32)
    acc = acc + b_ref[...]
    if relu:
        acc = jnp.maximum(acc, 0.0)
    o_ref[...] = acc.astype(o_ref.dtype)


def fused_matmul(x, w, b, *, relu=True, out_dtype=jnp.bfloat16, block_m=512):
    """Computes relu(x @ w + b), tiled (and double-buffered) over rows of x.

    x: (M, K) bf16, w: (K, N) bf16, b: (1, N) f32.
    K and N blocks span the full array dims (allowed by the (8,128) rule);
    no padding copies or output slices in the wrapper.
    """
    M, K = x.shape
    K2, N = w.shape
    assert K == K2 and b.shape == (1, N)

    bm = M if M <= block_m else block_m       # block_m is a multiple of 256
    grid_m = pl.cdiv(M, bm)

    kern = functools.partial(_matmul_bias_kernel, relu=relu)
    return pl.pallas_call(
        kern,
        out_shape=jax.ShapeDtypeStruct((M, N), out_dtype),
        grid=(grid_m,),
        in_specs=[
            pl.BlockSpec((bm, K), lambda i: (i, 0)),
            pl.BlockSpec((K, N), lambda i: (0, 0)),
            pl.BlockSpec((1, N), lambda i: (0, 0)),
        ],
        out_specs=pl.BlockSpec((bm, N), lambda i: (i, 0)),
        compiler_params=pltpu.CompilerParams(
            dimension_semantics=("parallel",),   # shard row tiles across TCs (v7x)
            vmem_limit_bytes=48 << 20,           # headroom on v7x's 64 MiB VMEM
        ),
    )(x, w, b)


# ------------------------------ glue (im2col) ----------------------------- #

def _im2col_nhwc(x, k, stride):
    """x: (B, H, W, C) -> ((B*OH*OW, k*k*C), OH, OW), column order (KH, KW, C).

    Patches are concatenated along the channel (lane) axis, so no 6-D
    transpose is needed; the reshape only flattens leading dims.
    """
    B, H, W, C = x.shape
    OH = (H - k) // stride + 1
    OW = (W - k) // stride + 1
    patches = []
    for dy in range(k):
        for dx in range(k):
            patches.append(
                x[:, dy:dy + stride * (OH - 1) + 1:stride,
                      dx:dx + stride * (OW - 1) + 1:stride, :])
    cols = jnp.concatenate(patches, axis=-1)          # (B, OH, OW, k*k*C)
    return cols.reshape(B * OH * OW, k * k * C), OH, OW


def conv2d_relu(x, w_mat, b, k, stride, *, relu=True, out_dtype=jnp.bfloat16):
    """NHWC Conv2d (VALID) + bias + ReLU via im2col + fused Pallas matmul."""
    B = x.shape[0]
    cols, OH, OW = _im2col_nhwc(x, k, stride)
    OC = w_mat.shape[1]
    out = fused_matmul(cols, w_mat, b, relu=relu, out_dtype=out_dtype)
    return out.reshape(B, OH, OW, OC)                 # stays NHWC, no transpose


# ------------------------------ MNet params ------------------------------- #

def mnet_init(key, in_channels, num_actions):
    """Deterministic PyTorch-style (uniform +-1/sqrt(fan_in)) init, OIHW."""
    def uni(k, shape, fan_in):
        bound = 1.0 / jnp.sqrt(float(fan_in))
        return jax.random.uniform(k, shape, jnp.float32, -bound, bound)

    ks = jax.random.split(key, 10)
    p = {}
    p["w1"] = uni(ks[0], (32, in_channels, 8, 8), in_channels * 64)
    p["b1"] = uni(ks[1], (32,), in_channels * 64)
    p["w2"] = uni(ks[2], (64, 32, 4, 4), 32 * 16)
    p["b2"] = uni(ks[3], (64,), 32 * 16)
    p["w3"] = uni(ks[4], (64, 64, 3, 3), 64 * 9)
    p["b3"] = uni(ks[5], (64,), 64 * 9)
    p["wfc"] = uni(ks[6], (512, 64 * 7 * 7), 64 * 7 * 7)
    p["bfc"] = uni(ks[7], (512,), 64 * 7 * 7)
    p["wh"] = uni(ks[8], (num_actions, 512), 512)
    p["bh"] = uni(ks[9], (num_actions,), 512)
    return p


def prepare_params(p):
    """One-time preprocessing into kernel-ready (pre-transposed, bf16) layout.

    * conv weights OIHW -> (KH*KW*IC, OC), matching the im2col column order.
    * 1/255 normalization folded into w1 (weights only; bias untouched).
    * wfc columns permuted from PyTorch's (C,H,W) flatten order to NHWC
      (H,W,C) order, then transposed to (K, N).
    """
    def conv_w(w):
        OC, IC, KH, KW = w.shape
        return w.transpose(2, 3, 1, 0).reshape(KH * KW * IC, OC)

    q = {}
    q["w1"] = (conv_w(p["w1"]) / 255.0).astype(jnp.bfloat16)
    q["b1"] = p["b1"].reshape(1, -1).astype(jnp.float32)
    q["w2"] = conv_w(p["w2"]).astype(jnp.bfloat16)
    q["b2"] = p["b2"].reshape(1, -1).astype(jnp.float32)
    q["w3"] = conv_w(p["w3"]).astype(jnp.bfloat16)
    q["b3"] = p["b3"].reshape(1, -1).astype(jnp.float32)
    wfc = p["wfc"].reshape(512, 64, 7, 7).transpose(0, 2, 3, 1).reshape(512, -1)
    q["wfc"] = wfc.T.astype(jnp.bfloat16)                 # (3136, 512)
    q["bfc"] = p["bfc"].reshape(1, -1).astype(jnp.float32)
    q["wh"] = p["wh"].T.astype(jnp.bfloat16)               # (512, A)
    q["bh"] = p["bh"].reshape(1, -1).astype(jnp.float32)
    return q


# ------------------------------ MNet forward ------------------------------ #

def mnet_forward(kparams, x):
    """x: (B, C, 84, 84) NCHW (PyTorch convention)."""
    # Single NCHW -> NHWC transpose of the input; everything stays channel-last.
    h = jnp.transpose(x, (0, 2, 3, 1)).astype(jnp.bfloat16)
    h = conv2d_relu(h, kparams["w1"], kparams["b1"], 8, 4)   # (B,20,20,32)
    h = conv2d_relu(h, kparams["w2"], kparams["b2"], 4, 2)   # (B, 9, 9,64)
    h = conv2d_relu(h, kparams["w3"], kparams["b3"], 3, 1)   # (B, 7, 7,64)
    B = h.shape[0]
    h = h.reshape(B, -1)                                     # (H,W,C) flatten
    h = fused_matmul(h, kparams["wfc"], kparams["bfc"], relu=True)
    return fused_matmul(h, kparams["wh"], kparams["bh"], relu=False,
                        out_dtype=jnp.float32)


# ------------------------------- reference -------------------------------- #

def mnet_reference(params, x):
    h = x.astype(jnp.float32) / 255.0
    for w, b, s in [(params["w1"], params["b1"], 4),
                    (params["w2"], params["b2"], 2),
                    (params["w3"], params["b3"], 1)]:
        h = jax.lax.conv_general_dilated(
            h, w, (s, s), "VALID",
            dimension_numbers=("NCHW", "OIHW", "NCHW"),
            precision=jax.lax.Precision.HIGHEST)
        h = jnp.maximum(h + b[None, :, None, None], 0.0)
    h = h.reshape(h.shape[0], -1)
    h = jnp.maximum(h @ params["wfc"].T + params["bfc"], 0.0)
    return h @ params["wh"].T + params["bh"]


if __name__ == "__main__":
    in_channels, num_actions, batch = 4, 6, 2
    key = jax.random.PRNGKey(0)
    k_param, k_x = jax.random.split(key)

    params = mnet_init(k_param, in_channels, num_actions)
    kparams = prepare_params(params)

    # 84x84 spatial size is required by the architecture (64*7*7 flatten).
    x = jax.random.uniform(k_x, (batch, in_channels, 84, 84), jnp.float32,
                           0.0, 255.0)

    out = mnet_forward(kparams, x)
    out = jax.block_until_ready(out)
    assert out.shape == (batch, num_actions), out.shape

    ref = mnet_reference(params, x)
    assert jnp.allclose(out, ref, rtol=2e-2, atol=2e-2), (
        float(jnp.max(jnp.abs(out - ref))))

    print("KERNEL_OK")
</pallas_src>

<mosaic_0001>
module attributes {stable_mosaic.version = 11 : i64} {
  func.func @_matmul_bias_kernel(%arg0: i32, %arg1: memref<512x256xbf16, #tpu.memory_space<vmem>>, %arg2: memref<256x32xbf16, #tpu.memory_space<vmem>>, %arg3: memref<1x32xf32, #tpu.memory_space<vmem>>, %arg4: memref<512x32xbf16, #tpu.memory_space<vmem>>) attributes {dimension_semantics = [#tpu.dimension_semantics<parallel>], iteration_bounds = array<i64: 2>, scalar_prefetch = 0 : i64, scratch_operands = 0 : i64, tpu.core_type = #tpu.core_type<tc>, window_params = [{transform_indices = @transform_0, window_bounds = array<i64: 512, 256>}, {pipeline_mode = #tpu.pipeline_mode<synchronous>, transform_indices = @transform_1, window_bounds = array<i64: 256, 32>}, {pipeline_mode = #tpu.pipeline_mode<synchronous>, transform_indices = @transform_2, window_bounds = array<i64: 1, 32>}, {transform_indices = @transform_3, window_bounds = array<i64: 512, 32>}]} {
    %c0 = arith.constant 0 : index
    %c0_0 = arith.constant 0 : index
    %0 = vector.load %arg1[%c0, %c0_0] : memref<512x256xbf16, #tpu.memory_space<vmem>>, vector<512x256xbf16>
    %c0_1 = arith.constant 0 : index
    %c0_2 = arith.constant 0 : index
    %1 = vector.load %arg2[%c0_1, %c0_2] : memref<256x32xbf16, #tpu.memory_space<vmem>>, vector<256x32xbf16>
    %cst = arith.constant dense<0.000000e+00> : vector<512x32xf32>
    %2 = tpu.matmul %0, %1, %cst {dimension_numbers = #tpu.dot_dimension_numbers<[1], [0], [0], [1], [0, 0, 1, 1], [], []>} : vector<512x256xbf16>, vector<256x32xbf16>, vector<512x32xf32> -> vector<512x32xf32>
    %c0_3 = arith.constant 0 : index
    %c0_4 = arith.constant 0 : index
    %3 = vector.load %arg3[%c0_3, %c0_4] : memref<1x32xf32, #tpu.memory_space<vmem>>, vector<1x32xf32>
    %4 = vector.broadcast %3 : vector<1x32xf32> to vector<512x32xf32>
    %5 = arith.addf %2, %4 : vector<512x32xf32>
    %cst_5 = arith.constant 0.000000e+00 : f32
    %6 = vector.broadcast %cst_5 : f32 to vector<512x32xf32>
    %7 = arith.maximumf %5, %6 : vector<512x32xf32>
    %8 = arith.truncf %7 : vector<512x32xf32> to vector<512x32xbf16>
    %c0_6 = arith.constant 0 : index
    %c0_7 = arith.constant 0 : index
    %9 = vector.load %arg4[%c0_6, %c0_7] : memref<512x32xbf16, #tpu.memory_space<vmem>>, vector<512x32xbf16>
    tpu.vector_store %arg4[%c0_6, %c0_7], %8 {strides = array<i32>} : memref<512x32xbf16, #tpu.memory_space<vmem>>, vector<512x32xbf16>,
    return
  }
  func.func @transform_0(%arg0: i32) -> (i32, i32) {
    %c0_i32 = arith.constant 0 : i32
    %c0_i32_0 = arith.constant 0 : i32
    return %arg0, %c0_i32 : i32, i32
  }
  func.func @transform_1(%arg0: i32) -> (i32, i32) {
    %c0_i32 = arith.constant 0 : i32
    %c0_i32_0 = arith.constant 0 : i32
    %c0_i32_1 = arith.constant 0 : i32
    return %c0_i32, %c0_i32_0 : i32, i32
  }
  func.func @transform_2(%arg0: i32) -> (i32, i32) {
    %c0_i32 = arith.constant 0 : i32
    %c0_i32_0 = arith.constant 0 : i32
    %c0_i32_1 = arith.constant 0 : i32
    return %c0_i32, %c0_i32_0 : i32, i32
  }
  func.func @transform_3(%arg0: i32) -> (i32, i32) {
    %c0_i32 = arith.constant 0 : i32
    %c0_i32_0 = arith.constant 0 : i32
    return %arg0, %c0_i32 : i32, i32
  }
}

</mosaic_0001>

<llo_original>
// kernel: tpu_custom_call.1
$region0: #{tpu_custom_call.1}
  #allocation0 [shape = 'u32[]', space=smem, size = 0x4, offset = 0x4, fixed_abs, tag = 'smem constant byte address 0x4 - core index']
  #allocation1 [shape = 'u32[144,128]{1,0:T(1,128)}', space=vmem, size = 0x12000, scoped, tag = 'internal scratch']
  %s0 = inlined_call_operand.hbm [shape: bf16[800,256], index: 0, kind: input, shape index: {}]
  %s1 = inlined_call_operand.vmem [shape: bf16[256,32], index: 1, kind: input, shape index: {}]
  %s2 = inlined_call_operand.vmem [shape: f32[1,32], index: 2, kind: input, shape index: {}]
  %s3 = inlined_call_operand.vmem [shape: bf16[800,32], index: 3, kind: output, shape index: {}]
  %s4 = sld [smem:[#allocation0]]
  $region93: #{tpu_custom_call.1} parent=0
    _
  %s6 = ssub.s32 1, %s4
  %s7 = scalar_select 0, %s6, %s4
  $region1: #{tpu_custom_call.1} parent=0
    #allocation2 [shape = 'u8[524288]{0}', space=vmem, size = 0x80000, scoped, tag = 'input window, operand 0']
    #allocation3 [shape = 's32[2]{0}', space=sflag, size = 0x8, scoped, tag = 'scoped memory for tpu_custom_call.1']
    #allocation4 [shape = 'u8[262144]{0}', space=vmem, size = 0x40000, scoped, tag = 'output window, operand 0']
    %8 = vsyncpa [#allocation3], 0
    %s9 = scalar_lea.sflag [#allocation3], 1
    %10 = vsyncpa %s9, 0
    loop: start=0, step=1, limit=4
    $region2: #{tpu_custom_call.1} parent=1 // loop_pre_header
      _
    $region3: #{tpu_custom_call.1} parent=1 // loop_header
      %s12 = sphi 0, %s16
      %p13 = scmp.ge.s32.totalorder %s12, 4
      %s22 = sphi 0, %s24
      %s25 = sphi 0, %s22
      %s26 = sphi 0, %s25
      %s42 = sphi 0, %s26
      %s46 = sphi 0, %s46
      %s48 = sphi 0, %s46
      %s49 = sphi 0, %s48
      %s63 = sphi 0, %s49
      %s67 = sphi 0, %s67
      %s69 = sphi 0, %s67
      %s70 = sphi 0, %s69
      %s84 = sphi 0, %s70
      %s90 = sphi 0, %s92
      %s93 = sphi 0, %s90
      %s94 = sphi 0, %s93
      %s110 = sphi 0, %s94
    $region4: #{tpu_custom_call.1} parent=1 // loop_header_branch
      %15 = sbr.rel (%p13) target = $region8
    $region5: #{tpu_custom_call.1} parent=1 // loop_body
      %s17 = ssub.s32 %s12, 1
      %s18 = ssub.s32 %s12, 2
      %s19 = sadd.s32 %s12, 1
      %s20 = ssub.s32 %s12, %s19
      %p21 = scmp.eq.s32.totalorder %s20, 0
      %s23 = sadd.s32 %s22, 1
      %s24 = scalar_select %p21, %s22, %s23
      %p27 = pneg %p21
      %p28 = scmp.eq.s32.totalorder %s12, 1
      %p29 = por %p27, %p28
      %p30 = scmp.ne.s32.totalorder %s22, %s25
      %p31 = scmp.eq.s32.totalorder %s12, 0
      %p32 = por %p30, %p31
      %p33 = scmp.ne.s32.totalorder %s22, %s25
      %p34 = scmp.eq.s32.totalorder %s17, 1
      %p35 = por %p33, %p34
      %p36 = scmp.ne.s32.totalorder %s25, %s26
      %p37 = scmp.eq.s32.totalorder %s17, 0
      %p38 = por %p36, %p37
      %p39 = scmp.ne.s32.totalorder %s25, %s26
      %p40 = scmp.eq.s32.totalorder %s18, 1
      %p41 = por %p39, %p40
      %p43 = scmp.ne.s32.totalorder %s26, %s42
      %p44 = scmp.eq.s32.totalorder %s18, 0
      %p45 = por %p43, %p44
      %s47 = sadd.s32 %s46, 1
      %p50 = scmp.eq.s32.totalorder %s12, 1
      %p51 = scmp.ne.s32.totalorder %s46, %s48
      %p52 = scmp.eq.s32.totalorder %s12, 0
      %p53 = por %p51, %p52
      %p54 = scmp.ne.s32.totalorder %s46, %s48
      %p55 = scmp.eq.s32.totalorder %s17, 1
      %p56 = por %p54, %p55
      %p57 = scmp.ne.s32.totalorder %s48, %s49
      %p58 = scmp.eq.s32.totalorder %s17, 0
      %p59 = por %p57, %p58
      %p60 = scmp.ne.s32.totalorder %s48, %s49
      %p61 = scmp.eq.s32.totalorder %s18, 1
      %p62 = por %p60, %p61
      %p64 = scmp.ne.s32.totalorder %s49, %s63
      %p65 = scmp.eq.s32.totalorder %s18, 0
      %p66 = por %p64, %p65
      %s68 = sadd.s32 %s67, 1
      %p71 = scmp.eq.s32.totalorder %s12, 1
      %p72 = scmp.ne.s32.totalorder %s67, %s69
      %p73 = scmp.eq.s32.totalorder %s12, 0
      %p74 = por %p72, %p73
      %p75 = scmp.ne.s32.totalorder %s67, %s69
      %p76 = scmp.eq.s32.totalorder %s17, 1
      %p77 = por %p75, %p76
      %p78 = scmp.ne.s32.totalorder %s69, %s70
      %p79 = scmp.eq.s32.totalorder %s17, 0
      %p80 = por %p78, %p79
      %p81 = scmp.ne.s32.totalorder %s69, %s70
      %p82 = scmp.eq.s32.totalorder %s18, 1
      %p83 = por %p81, %p82
      %p85 = scmp.ne.s32.totalorder %s70, %s84
      %p86 = scmp.eq.s32.totalorder %s18, 0
      %p87 = por %p85, %p86
      %s88 = ssub.s32 %s12, %s19
      %p89 = scmp.eq.s32.totalorder %s88, 0
      %s91 = sadd.s32 %s90, 1
      %s92 = scalar_select %p89, %s90, %s91
      %p95 = pneg %p89
      %p96 = scmp.eq.s32.totalorder %s12, 1
      %p97 = por %p95, %p96
      %p98 = scmp.ne.s32.totalorder %s90, %s93
      %p99 = scmp.eq.s32.totalorder %s12, 0
      %p100 = por %p98, %p99
      %p101 = scmp.ne.s32.totalorder %s90, %s93
      %p102 = scmp.eq.s32.totalorder %s17, 1
      %p103 = por %p101, %p102
      %p104 = scmp.ne.s32.totalorder %s93, %s94
      %p105 = scmp.eq.s32.totalorder %s17, 0
      %p106 = por %p104, %p105
      %p107 = scmp.ne.s32.totalorder %s93, %s94
      %p108 = scmp.eq.s32.totalorder %s18, 1
      %p109 = por %p107, %p108
      %p111 = scmp.ne.s32.totalorder %s94, %s110
      %p112 = scmp.eq.s32.totalorder %s18, 0
      %p113 = por %p111, %p112
      %p114 = scmp.le.s32.totalorder 1, %s12
      %p115 = scmp.lt.s32.totalorder %s12, 3
      %p116 = pnand %p114, %p115
      %p117 = pneg %p116
      // Predicated region
      $region9: #{tpu_custom_call.1} parent=5 // pred_check
        _
      $region10: #{tpu_custom_call.1} parent=5 // pred_check_branch
        %119 = sbr.rel (%p116) target = $region12
      $region11: #{tpu_custom_call.1} parent=5 // pred_region
        %s120 = ssub.s32 %s12, 1
        // Predicated region
        $region13: #{tpu_custom_call.1} parent=11 // pred_check
          %p121 = pneg %p59
        $region14: #{tpu_custom_call.1} parent=11 // pred_check_branch
          %123 = sbr.rel (%p121) target = $region16
        $region15: #{tpu_custom_call.1} parent=11 // pred_region
          _
        $region16: #{tpu_custom_call.1} parent=11 // pred_fallthru
          _
        // Predicated region
        $region17: #{tpu_custom_call.1} parent=11 // pred_check
          %p124 = pneg %p80
        $region18: #{tpu_custom_call.1} parent=11 // pred_check_branch
          %126 = sbr.rel (%p124) target = $region20
        $region19: #{tpu_custom_call.1} parent=11 // pred_region
          _
        $region20: #{tpu_custom_call.1} parent=11 // pred_fallthru
          _
      $region12: #{tpu_custom_call.1} parent=5 // pred_fallthru
        _
      %p127 = scmp.lt.s32.totalorder %s12, 2
      // Predicated region
      $region21: #{tpu_custom_call.1} parent=5 // pred_check
        %p128 = pneg %p127
      $region22: #{tpu_custom_call.1} parent=5 // pred_check_branch
        %130 = sbr.rel (%p128) target = $region24
      $region23: #{tpu_custom_call.1} parent=5 // pred_region
        // Predicated region
        $region25: #{tpu_custom_call.1} parent=23 // pred_check
          %p131 = pneg %p32
        $region26: #{tpu_custom_call.1} parent=23 // pred_check_branch
          %133 = sbr.rel (%p131) target = $region28
        $region27: #{tpu_custom_call.1} parent=23 // pred_region
          %s134 = sand.u32 %s22, 1
          %s135 = scalar_lea.sflag [#allocation3], %s134
          %s136 = sand.u32 %s22, 1
          %s137 = smul.addr %s136, 512
          %s138 = scalar_lea.vmem [#allocation2], %s137
          %s139 = smul.u32 64, %s12
          %s140 = ssub.s32 100, %s139
          %p141 = scmp.lt.s32.totalorder %s140, 64
          %s142 = scalar_select %p141, %s140, 64
          %s143 = smul.u32 64, %s142
          %s144 = smul.u32 %s143, 2
          %s146 = ssub.s32 8192, %s144
          %147 = vsyncadd %s135, %s146
          %p148 = scmp.ne.s32.totalorder 0, %s144
          %s149 = smul.addr %s139, 2
          %s150 = smul.addr %s149, 64
          %s151 = scalar_lea.hbm %s0, %s150
          %s152 = smul.u32 8, %s142
          %s153 = sshll.u32 %s138, 4
          %s154 = int_to_ptr.vmem [resolvable:$true] %s153
          %s155 = sshll.u32 %s152, 4
          %159 = dma.hbm_to_vmem [thread:$0]  (%p148), %s151, %s155, %s154, %s135, 128, 128, 8
        $region28: #{tpu_custom_call.1} parent=23 // pred_fallthru
          _
      $region24: #{tpu_custom_call.1} parent=5 // pred_fallthru
        _
      %p160 = scmp.le.s32.totalorder 1, %s12
      %p161 = scmp.lt.s32.totalorder %s12, 3
      %p162 = pnand %p160, %p161
      %p163 = pneg %p162
      // Predicated region
      $region29: #{tpu_custom_call.1} parent=5 // pred_check
        _
      $region30: #{tpu_custom_call.1} parent=5 // pred_check_branch
        %165 = sbr.rel (%p162) target = $region32
      $region31: #{tpu_custom_call.1} parent=5 // pred_region
        %s166 = ssub.s32 %s12, 1
        %s167 = sand.u32 %s25, 1
        %s168 = scalar_lea.sflag [#allocation3], %s167
        %s169 = sand.u32 %s25, 1
        %s170 = smul.addr %s169, 512
        %s171 = scalar_lea.vmem [#allocation2], %s170
        // Predicated region
        $region33: #{tpu_custom_call.1} parent=31 // pred_check
          %p172 = pneg %p38
        $region34: #{tpu_custom_call.1} parent=31 // pred_check_branch
          %174 = sbr.rel (%p172) target = $region36
        $region35: #{tpu_custom_call.1} parent=31 // pred_region
          %175 = dma.done %s168, 8192
        $region36: #{tpu_custom_call.1} parent=31 // pred_fallthru
          _
        %s176 = sand.u32 %s25, 1
        %s177 = scalar_lea.sflag [#allocation3], %s176
        %s178 = sand.u32 %s25, 1
        %s179 = smul.addr %s178, 512
        %s180 = scalar_lea.vmem [#allocation2], %s179
        %p181 = pneg %p38
        %p182 = pneg %p35
        %p183 = pneg %p59
        %p184 = pneg %p56
        %p185 = pneg %p80
        %p186 = pneg %p77
        %p187 = pneg %p106
        %p188 = pneg %p103
        %s189 = sand.u32 %s93, 1
        %s190 = sand.u32 %s93, 1
        %s191 = smul.addr %s190, 256
        %s192 = scalar_lea.vmem [#allocation4], %s191
        %s193 = smul.u32 64, %s17
        %s194 = ssub.s32 100, %s193
        %p195 = scmp.lt.s32.totalorder %s194, 64
        %s196 = scalar_select %p195, %s194, 64
        %s197 = smul.u32 64, %s196
        %s198 = smul.u32 %s197, 2
        %s199 = smul.u32 64, %s17
        %s200 = ssub.s32 100, %s199
        %p201 = scmp.lt.s32.totalorder %s200, 64
        %s202 = scalar_select %p201, %s200, 64
        %s203 = smul.u32 64, %s202
        %v205 = vld [vmem:[%s171] sm:$0xff]
        %v206 = vld [vmem:[%s171 + $0x8] sm:$0xff]
        %v207 = vld [vmem:[%s171 + $0x10] sm:$0xff]
        %v208 = vld [vmem:[%s171 + $0x18] sm:$0xff]
        %v209 = vld [vmem:[%s171 + $0x20] sm:$0xff]
        %v210 = vld [vmem:[%s171 + $0x28] sm:$0xff]
        %v211 = vld [vmem:[%s171 + $0x30] sm:$0xff]
        %v212 = vld [vmem:[%s171 + $0x38] sm:$0xff]
        %v213 = vld [vmem:[%s171 + $0x40] sm:$0xff]
        %v214 = vld [vmem:[%s171 + $0x48] sm:$0xff]
        %v215 = vld [vmem:[%s171 + $0x50] sm:$0xff]
        %v216 = vld [vmem:[%s171 + $0x58] sm:$0xff]
        %v217 = vld [vmem:[%s171 + $0x60] sm:$0xff]
        %v218 = vld [vmem:[%s171 + $0x68] sm:$0xff]
        %v219 = vld [vmem:[%s171 + $0x70] sm:$0xff]
        %v220 = vld [vmem:[%s171 + $0x78] sm:$0xff]
        %v221 = vld [vmem:[%s171 + $0x80] sm:$0xff]
        %v222 = vld [vmem:[%s171 + $0x88] sm:$0xff]
        %v223 = vld [vmem:[%s171 + $0x90] sm:$0xff]
        %v224 = vld [vmem:[%s171 + $0x98] sm:$0xff]
        %v225 = vld [vmem:[%s171 + $0xa0] sm:$0xff]
        %v226 = vld [vmem:[%s171 + $0xa8] sm:$0xff]
        %v227 = vld [vmem:[%s171 + $0xb0] sm:$0xff]
        %v228 = vld [vmem:[%s171 + $0xb8] sm:$0xff]
        %v229 = vld [vmem:[%s171 + $0xc0] sm:$0xff]
        %v230 = vld [vmem:[%s171 + $0xc8] sm:$0xff]
        %v231 = vld [vmem:[%s171 + $0xd0] sm:$0xff]
        %v232 = vld [vmem:[%s171 + $0xd8] sm:$0xff]
        %v233 = vld [vmem:[%s171 + $0xe0] sm:$0xff]
        %v234 = vld [vmem:[%s171 + $0xe8] sm:$0xff]
        %v235 = vld [vmem:[%s171 + $0xf0] sm:$0xff]
        %v236 = vld [vmem:[%s171 + $0xf8] sm:$0xff]
        %v237 = vld [vmem:[%s171 + $0x100] sm:$0xff]
        %v238 = vld [vmem:[%s171 + $0x108] sm:$0xff]
        %v239 = vld [vmem:[%s171 + $0x110] sm:$0xff]
        %v240 = vld [vmem:[%s171 + $0x118] sm:$0xff]
        %v241 = vld [vmem:[%s171 + $0x120] sm:$0xff]
        %v242 = vld [vmem:[%s171 + $0x128] sm:$0xff]
        %v243 = vld [vmem:[%s171 + $0x130] sm:$0xff]
        %v244 = vld [vmem:[%s171 + $0x138] sm:$0xff]
        %v245 = vld [vmem:[%s171 + $0x140] sm:$0xff]
        %v246 = vld [vmem:[%s171 + $0x148] sm:$0xff]
        %v247 = vld [vmem:[%s171 + $0x150] sm:$0xff]
        %v248 = vld [vmem:[%s171 + $0x158] sm:$0xff]
        %v249 = vld [vmem:[%s171 + $0x160] sm:$0xff]
        %v250 = vld [vmem:[%s171 + $0x168] sm:$0xff]
        %v251 = vld [vmem:[%s171 + $0x170] sm:$0xff]
        %v252 = vld [vmem:[%s171 + $0x178] sm:$0xff]
        %v253 = vld [vmem:[%s171 + $0x180] sm:$0xff]
        %v254 = vld [vmem:[%s171 + $0x188] sm:$0xff]
        %v255 = vld [vmem:[%s171 + $0x190] sm:$0xff]
        %v256 = vld [vmem:[%s171 + $0x198] sm:$0xff]
        %v257 = vld [vmem:[%s171 + $0x1a0] sm:$0xff]
        %v258 = vld [vmem:[%s171 + $0x1a8] sm:$0xff]
        %v259 = vld [vmem:[%s171 + $0x1b0] sm:$0xff]
        %v260 = vld [vmem:[%s171 + $0x1b8] sm:$0xff]
        %v261 = vld [vmem:[%s171 + $0x1c0] sm:$0xff]
        %v262 = vld [vmem:[%s171 + $0x1c8] sm:$0xff]
        %v263 = vld [vmem:[%s171 + $0x1d0] sm:$0xff]
        %v264 = vld [vmem:[%s171 + $0x1d8] sm:$0xff]
        %v265 = vld [vmem:[%s171 + $0x1e0] sm:$0xff]
        %v266 = vld [vmem:[%s171 + $0x1e8] sm:$0xff]
        %v267 = vld [vmem:[%s171 + $0x1f0] sm:$0xff]
        %v268 = vld [vmem:[%s171 + $0x1f8] sm:$0xff]
        %v269 = vld [vmem:[%s1] sm:$0xf]
        %v270 = vld [vmem:[%s1 + $0x4] sm:$0xf]
        %v271 = vld [vmem:[%s1 + $0x8] sm:$0xf]
        %v272 = vld [vmem:[%s1 + $0xc] sm:$0xf]
        %v273 = vld [vmem:[%s1 + $0x10] sm:$0xf]
        %v274 = vld [vmem:[%s1 + $0x14] sm:$0xf]
        %v275 = vld [vmem:[%s1 + $0x18] sm:$0xf]
        %v276 = vld [vmem:[%s1 + $0x1c] sm:$0xf]
        %v277 = vld [vmem:[%s1 + $0x20] sm:$0xf]
        %v278 = vld [vmem:[%s1 + $0x24] sm:$0xf]
        %v279 = vld [vmem:[%s1 + $0x28] sm:$0xf]
        %v280 = vld [vmem:[%s1 + $0x2c] sm:$0xf]
        %v281 = vld [vmem:[%s1 + $0x30] sm:$0xf]
        %v282 = vld [vmem:[%s1 + $0x34] sm:$0xf]
        %v283 = vld [vmem:[%s1 + $0x38] sm:$0xf]
        %v284 = vld [vmem:[%s1 + $0x3c] sm:$0xf]
        %v285 = vld [vmem:[%s1 + $0x40] sm:$0xf]
        %v286 = vld [vmem:[%s1 + $0x44] sm:$0xf]
        %v287 = vld [vmem:[%s1 + $0x48] sm:$0xf]
        %v288 = vld [vmem:[%s1 + $0x4c] sm:$0xf]
        %v289 = vld [vmem:[%s1 + $0x50] sm:$0xf]
        %v290 = vld [vmem:[%s1 + $0x54] sm:$0xf]
        %v291 = vld [vmem:[%s1 + $0x58] sm:$0xf]
        %v292 = vld [vmem:[%s1 + $0x5c] sm:$0xf]
        %v293 = vld [vmem:[%s1 + $0x60] sm:$0xf]
        %v294 = vld [vmem:[%s1 + $0x64] sm:$0xf]
        %v295 = vld [vmem:[%s1 + $0x68] sm:$0xf]
        %v296 = vld [vmem:[%s1 + $0x6c] sm:$0xf]
        %v297 = vld [vmem:[%s1 + $0x70] sm:$0xf]
        %v298 = vld [vmem:[%s1 + $0x74] sm:$0xf]
        %v299 = vld [vmem:[%s1 + $0x78] sm:$0xf]
        %v300 = vld [vmem:[%s1 + $0x7c] sm:$0xf]
        %v301 = vld [vmem:[%s2] sm:$0x1]
        %v303 = vlaneseq
        %v304 = vshrl.u32 %v303, 7
        %v305 = vsub.s32 0, %v304
        %v306 = vrot.slane %v301, %v305
        %v372 = vunpack.c.l.b16 %v205
        %v373 = vunpack.c.h.b16 %v205
        %v374 = vunpack.c.l.b16 %v206
        %v375 = vunpack.c.h.b16 %v206
        %v376 = vunpack.c.l.b16 %v207
        %v377 = vunpack.c.h.b16 %v207
        %v378 = vunpack.c.l.b16 %v208
        %v379 = vunpack.c.h.b16 %v208
        %v380 = vunpack.c.l.b16 %v209
        %v381 = vunpack.c.h.b16 %v209
        %v382 = vunpack.c.l.b16 %v210
        %v383 = vunpack.c.h.b16 %v210
        %v384 = vunpack.c.l.b16 %v211
        %v385 = vunpack.c.h.b16 %v211
        %v386 = vunpack.c.l.b16 %v212
        %v387 = vunpack.c.h.b16 %v212
        %v388 = vunpack.c.l.b16 %v213
        %v389 = vunpack.c.h.b16 %v213
        %v390 = vunpack.c.l.b16 %v214
        %v391 = vunpack.c.h.b16 %v214
        %v392 = vunpack.c.l.b16 %v215
        %v393 = vunpack.c.h.b16 %v215
        %v394 = vunpack.c.l.b16 %v216
        %v395 = vunpack.c.h.b16 %v216
        %v396 = vunpack.c.l.b16 %v217
        %v397 = vunpack.c.h.b16 %v217
        %v398 = vunpack.c.l.b16 %v218
        %v399 = vunpack.c.h.b16 %v218
        %v400 = vunpack.c.l.b16 %v219
        %v401 = vunpack.c.h.b16 %v219
        %v402 = vunpack.c.l.b16 %v220
        %v403 = vunpack.c.h.b16 %v220
        %v404 = vunpack.c.l.b16 %v221
        %v405 = vunpack.c.h.b16 %v221
        %v406 = vunpack.c.l.b16 %v222
        %v407 = vunpack.c.h.b16 %v222
        %v408 = vunpack.c.l.b16 %v223
        %v409 = vunpack.c.h.b16 %v223
        %v410 = vunpack.c.l.b16 %v224
        %v411 = vunpack.c.h.b16 %v224
        %v412 = vunpack.c.l.b16 %v225
        %v413 = vunpack.c.h.b16 %v225
        %v414 = vunpack.c.l.b16 %v226
        %v415 = vunpack.c.h.b16 %v226
        %v416 = vunpack.c.l.b16 %v227
        %v417 = vunpack.c.h.b16 %v227
        %v418 = vunpack.c.l.b16 %v228
        %v419 = vunpack.c.h.b16 %v228
        %v420 = vunpack.c.l.b16 %v229
        %v421 = vunpack.c.h.b16 %v229
        %v422 = vunpack.c.l.b16 %v230
        %v423 = vunpack.c.h.b16 %v230
        %v424 = vunpack.c.l.b16 %v231
        %v425 = vunpack.c.h.b16 %v231
        %v426 = vunpack.c.l.b16 %v232
        %v427 = vunpack.c.h.b16 %v232
        %v428 = vunpack.c.l.b16 %v233
        %v429 = vunpack.c.h.b16 %v233
        %v430 = vunpack.c.l.b16 %v234
        %v431 = vunpack.c.h.b16 %v234
        %v432 = vunpack.c.l.b16 %v235
        %v433 = vunpack.c.h.b16 %v235
        %v434 = vunpack.c.l.b16 %v236
        %v435 = vunpack.c.h.b16 %v236
        %v436 = vunpack.c.l.b16 %v237
        %v437 = vunpack.c.h.b16 %v237
        %v438 = vunpack.c.l.b16 %v238
        %v439 = vunpack.c.h.b16 %v238
        %v440 = vunpack.c.l.b16 %v239
        %v441 = vunpack.c.h.b16 %v239
        %v442 = vunpack.c.l.b16 %v240
        %v443 = vunpack.c.h.b16 %v240
        %v444 = vunpack.c.l.b16 %v241
        %v445 = vunpack.c.h.b16 %v241
        %v446 = vunpack.c.l.b16 %v242
        %v447 = vunpack.c.h.b16 %v242
        %v448 = vunpack.c.l.b16 %v243
        %v449 = vunpack.c.h.b16 %v243
        %v450 = vunpack.c.l.b16 %v244
        %v451 = vunpack.c.h.b16 %v244
        %v452 = vunpack.c.l.b16 %v245
        %v453 = vunpack.c.h.b16 %v245
        %v454 = vunpack.c.l.b16 %v246
        %v455 = vunpack.c.h.b16 %v246
        %v456 = vunpack.c.l.b16 %v247
        %v457 = vunpack.c.h.b16 %v247
        %v458 = vunpack.c.l.b16 %v248
        %v459 = vunpack.c.h.b16 %v248
        %v460 = vunpack.c.l.b16 %v249
        %v461 = vunpack.c.h.b16 %v249
        %v462 = vunpack.c.l.b16 %v250
        %v463 = vunpack.c.h.b16 %v250
        %v464 = vunpack.c.l.b16 %v251
        %v465 = vunpack.c.h.b16 %v251
        %v466 = vunpack.c.l.b16 %v252
        %v467 = vunpack.c.h.b16 %v252
        %v468 = vunpack.c.l.b16 %v253
        %v469 = vunpack.c.h.b16 %v253
        %v470 = vunpack.c.l.b16 %v254
        %v471 = vunpack.c.h.b16 %v254
        %v472 = vunpack.c.l.b16 %v255
        %v473 = vunpack.c.h.b16 %v255
        %v474 = vunpack.c.l.b16 %v256
        %v475 = vunpack.c.h.b16 %v256
        %v476 = vunpack.c.l.b16 %v257
        %v477 = vunpack.c.h.b16 %v257
        %v478 = vunpack.c.l.b16 %v258
        %v479 = vunpack.c.h.b16 %v258
        %v480 = vunpack.c.l.b16 %v259
        %v481 = vunpack.c.h.b16 %v259
        %v482 = vunpack.c.l.b16 %v260
        %v483 = vunpack.c.h.b16 %v260
        %v484 = vunpack.c.l.b16 %v261
        %v485 = vunpack.c.h.b16 %v261
        %v486 = vunpack.c.l.b16 %v262
        %v487 = vunpack.c.h.b16 %v262
        %v488 = vunpack.c.l.b16 %v263
        %v489 = vunpack.c.h.b16 %v263
        %v490 = vunpack.c.l.b16 %v264
        %v491 = vunpack.c.h.b16 %v264
        %v492 = vunpack.c.l.b16 %v265
        %v493 = vunpack.c.h.b16 %v265
        %v494 = vunpack.c.l.b16 %v266
        %v495 = vunpack.c.h.b16 %v266
        %v496 = vunpack.c.l.b16 %v267
        %v497 = vunpack.c.h.b16 %v267
        %v498 = vunpack.c.l.b16 %v268
        %v499 = vunpack.c.h.b16 %v268
        %v500 = vpack.c.b16 %v374, %v372
        %v501 = vpack.c.b16 %v375, %v373
        %v502 = vpack.c.b16 %v378, %v376
        %v503 = vpack.c.b16 %v379, %v377
        %v504 = vpack.c.b16 %v382, %v380
        %v505 = vpack.c.b16 %v383, %v381
        %v506 = vpack.c.b16 %v386, %v384
        %v507 = vpack.c.b16 %v387, %v385
        %v508 = vpack.c.b16 %v390, %v388
        %v509 = vpack.c.b16 %v391, %v389
        %v510 = vpack.c.b16 %v394, %v392
        %v511 = vpack.c.b16 %v395, %v393
        %v512 = vpack.c.b16 %v398, %v396
        %v513 = vpack.c.b16 %v399, %v397
        %v514 = vpack.c.b16 %v402, %v400
        %v515 = vpack.c.b16 %v403, %v401
        %v516 = vpack.c.b16 %v406, %v404
        %v517 = vpack.c.b16 %v407, %v405
        %v518 = vpack.c.b16 %v410, %v408
        %v519 = vpack.c.b16 %v411, %v409
        %v520 = vpack.c.b16 %v414, %v412
        %v521 = vpack.c.b16 %v415, %v413
        %v522 = vpack.c.b16 %v418, %v416
        %v523 = vpack.c.b16 %v419, %v417
        %v524 = vpack.c.b16 %v422, %v420
        %v525 = vpack.c.b16 %v423, %v421
        %v526 = vpack.c.b16 %v426, %v424
        %v527 = vpack.c.b16 %v427, %v425
        %v528 = vpack.c.b16 %v430, %v428
        %v529 = vpack.c.b16 %v431, %v429
        %v530 = vpack.c.b16 %v434, %v432
        %v531 = vpack.c.b16 %v435, %v433
        %v532 = vpack.c.b16 %v438, %v436
        %v533 = vpack.c.b16 %v439, %v437
        %v534 = vpack.c.b16 %v442, %v440
        %v535 = vpack.c.b16 %v443, %v441
        %v536 = vpack.c.b16 %v446, %v444
        %v537 = vpack.c.b16 %v447, %v445
        %v538 = vpack.c.b16 %v450, %v448
        %v539 = vpack.c.b16 %v451, %v449
        %v540 = vpack.c.b16 %v454, %v452
        %v541 = vpack.c.b16 %v455, %v453
        %v542 = vpack.c.b16 %v458, %v456
        %v543 = vpack.c.b16 %v459, %v457
        %v544 = vpack.c.b16 %v462, %v460
        %v545 = vpack.c.b16 %v463, %v461
        %v546 = vpack.c.b16 %v466, %v464
        %v547 = vpack.c.b16 %v467, %v465
        %v548 = vpack.c.b16 %v470, %v468
        %v549 = vpack.c.b16 %v471, %v469
        %v550 = vpack.c.b16 %v474, %v472
        %v551 = vpack.c.b16 %v475, %v473
        %v552 = vpack.c.b16 %v478, %v476
        %v553 = vpack.c.b16 %v479, %v477
        %v554 = vpack.c.b16 %v482, %v480
        %v555 = vpack.c.b16 %v483, %v481
        %v556 = vpack.c.b16 %v486, %v484
        %v557 = vpack.c.b16 %v487, %v485
        %v558 = vpack.c.b16 %v490, %v488
        %v559 = vpack.c.b16 %v491, %v489
        %v560 = vpack.c.b16 %v494, %v492
        %v561 = vpack.c.b16 %v495, %v493
        %v562 = vpack.c.b16 %v498, %v496
        %v563 = vpack.c.b16 %v499, %v497
        %v660 = vunpack.c.l.b16 %v269
        %v661 = vunpack.c.l.b16 %v270
        %v662 = vunpack.c.l.b16 %v271
        %v663 = vunpack.c.l.b16 %v272
        %v664 = vunpack.c.l.b16 %v273
        %v665 = vunpack.c.l.b16 %v274
        %v666 = vunpack.c.l.b16 %v275
        %v667 = vunpack.c.l.b16 %v276
        %v668 = vunpack.c.l.b16 %v277
        %v669 = vunpack.c.l.b16 %v278
        %v670 = vunpack.c.l.b16 %v279
        %v671 = vunpack.c.l.b16 %v280
        %v672 = vunpack.c.l.b16 %v281
        %v673 = vunpack.c.l.b16 %v282
        %v674 = vunpack.c.l.b16 %v283
        %v675 = vunpack.c.l.b16 %v284
        %v676 = vunpack.c.l.b16 %v285
        %v677 = vunpack.c.l.b16 %v286
        %v678 = vunpack.c.l.b16 %v287
        %v679 = vunpack.c.l.b16 %v288
        %v680 = vunpack.c.l.b16 %v289
        %v681 = vunpack.c.l.b16 %v290
        %v682 = vunpack.c.l.b16 %v291
        %v683 = vunpack.c.l.b16 %v292
        %v684 = vunpack.c.l.b16 %v293
        %v685 = vunpack.c.l.b16 %v294
        %v686 = vunpack.c.l.b16 %v295
        %v687 = vunpack.c.l.b16 %v296
        %v688 = vunpack.c.l.b16 %v297
        %v689 = vunpack.c.l.b16 %v298
        %v690 = vunpack.c.l.b16 %v299
        %v691 = vunpack.c.l.b16 %v300
        %v692 = vpack.c.b16 %v661, %v660
        %v693 = vpack.c.b16 %v663, %v662
        %v694 = vpack.c.b16 %v665, %v664
        %v695 = vpack.c.b16 %v667, %v666
        %v696 = vpack.c.b16 %v669, %v668
        %v697 = vpack.c.b16 %v671, %v670
        %v698 = vpack.c.b16 %v673, %v672
        %v699 = vpack.c.b16 %v675, %v674
        %v700 = vpack.c.b16 %v677, %v676
        %v701 = vpack.c.b16 %v679, %v678
        %v702 = vpack.c.b16 %v681, %v680
        %v703 = vpack.c.b16 %v683, %v682
        %v704 = vpack.c.b16 %v685, %v684
        %v705 = vpack.c.b16 %v687, %v686
        %v706 = vpack.c.b16 %v689, %v688
        %v707 = vpack.c.b16 %v691, %v690
        %724 = vmatprep.subr.bf16.mxu0 0
        %725 = vmatpush1.bf16.msra.mxu0 %v692
        %726 = vmatprep.subr.bf16.mxu0 0
        %727 = vmatpush1.bf16.msra.mxu0 %v693
        %728 = vmatprep.subr.bf16.mxu0 0
        %729 = vmatpush1.bf16.msra.mxu0 %v694
        %730 = vmatprep.subr.bf16.mxu0 0
        %731 = vmatpush1.bf16.msra.mxu0 %v695
        %732 = vmatprep.subr.bf16.mxu0 0
        %733 = vmatpush1.bf16.msra.mxu0 %v696
        %734 = vmatprep.subr.bf16.mxu0 0
        %735 = vmatpush1.bf16.msra.mxu0 %v697
        %736 = vmatprep.subr.bf16.mxu0 0
        %737 = vmatpush1.bf16.msra.mxu0 %v698
        %738 = vmatprep.subr.bf16.mxu0 0
        %739 = vmatpush1.bf16.msra.mxu0 %v699
        %740 = vmatprep.subr.bf16.mxu0 0
        %741 = vmatpush1.bf16.msra.mxu0 %v700
        %742 = vmatprep.subr.bf16.mxu0 0
        %743 = vmatpush1.bf16.msra.mxu0 %v701
        %744 = vmatprep.subr.bf16.mxu0 0
        %745 = vmatpush1.bf16.msra.mxu0 %v702
        %746 = vmatprep.subr.bf16.mxu0 0
        %747 = vmatpush1.bf16.msra.mxu0 %v703
        %748 = vmatprep.subr.bf16.mxu0 0
        %749 = vmatpush1.bf16.msra.mxu0 %v704
        %750 = vmatprep.subr.bf16.mxu0 0
        %751 = vmatpush1.bf16.msra.mxu0 %v705
        %752 = vmatprep.subr.bf16.mxu0 0
        %753 = vmatpush1.bf16.msra.mxu0 %v706
        %754 = vmatprep.subr.bf16.mxu0 0
        %755 = vmatpush1.bf16.msra.mxu0 %v707
        %756 = vmatprep.mubr.bf16.mxu0 %v501
        %757 = vmatmul.mubr.bf16.gmra.mrb[0].mxu0 %v500
        %v758 = vpop.f32.mrb[0].mxu0
        %v759 = vadd.f32 %v306, %v758
        %v760 = vpop.f32.mrb[0].mxu0
        %v761 = vpop.f32.mrb[0].mxu0
        %v762 = vadd.f32 %v306, %v761
        %v763 = vpop.f32.mrb[0].mxu0
        %764 = vmatprep.mubr.bf16.mxu0 %v503
        %765 = vmatmul.mubr.bf16.gmra.mrb[0].mxu0 %v502
        %v766 = vpop.f32.mrb[0].mxu0
        %v767 = vadd.f32 %v306, %v766
        %v768 = vpop.f32.mrb[0].mxu0
        %v769 = vpop.f32.mrb[0].mxu0
        %v770 = vadd.f32 %v306, %v769
        %v771 = vpop.f32.mrb[0].mxu0
        %772 = vmatprep.mubr.bf16.mxu0 %v505
        %773 = vmatmul.mubr.bf16.gmra.mrb[0].mxu0 %v504
        %v774 = vpop.f32.mrb[0].mxu0
        %v775 = vadd.f32 %v306, %v774
        %v776 = vpop.f32.mrb[0].mxu0
        %v777 = vpop.f32.mrb[0].mxu0
        %v778 = vadd.f32 %v306, %v777
        %v779 = vpop.f32.mrb[0].mxu0
        %780 = vmatprep.mubr.bf16.mxu0 %v507
        %781 = vmatmul.mubr.bf16.gmra.mrb[0].mxu0 %v506
        %v782 = vpop.f32.mrb[0].mxu0
        %v783 = vadd.f32 %v306, %v782
        %v784 = vpop.f32.mrb[0].mxu0
        %v785 = vpop.f32.mrb[0].mxu0
        %v786 = vadd.f32 %v306, %v785
        %v787 = vpop.f32.mrb[0].mxu0
        %788 = vmatprep.mubr.bf16.mxu0 %v509
        %789 = vmatmul.mubr.bf16.gmra.mrb[0].mxu0 %v508
        %v790 = vpop.f32.mrb[0].mxu0
        %v791 = vadd.f32 %v306, %v790
        %v792 = vpop.f32.mrb[0].mxu0
        %v793 = vpop.f32.mrb[0].mxu0
        %v794 = vadd.f32 %v306, %v793
        %v795 = vpop.f32.mrb[0].mxu0
        %796 = vmatprep.mubr.bf16.mxu0 %v511
        %797 = vmatmul.mubr.bf16.gmra.mrb[0].mxu0 %v510
        %v798 = vpop.f32.mrb[0].mxu0
        %v799 = vadd.f32 %v306, %v798
        %v800 = vpop.f32.mrb[0].mxu0
        %v801 = vpop.f32.mrb[0].mxu0
        %v802 = vadd.f32 %v306, %v801
        %v803 = vpop.f32.mrb[0].mxu0
        %804 = vmatprep.mubr.bf16.mxu0 %v513
        %805 = vmatmul.mubr.bf16.gmra.mrb[0].mxu0 %v512
        %v806 = vpop.f32.mrb[0].mxu0
        %v807 = vadd.f32 %v306, %v806
        %v808 = vpop.f32.mrb[0].mxu0
        %v809 = vpop.f32.mrb[0].mxu0
        %v810 = vadd.f32 %v306, %v809
        %v811 = vpop.f32.mrb[0].mxu0
        %812 = vmatprep.mubr.bf16.mxu0 %v515
        %813 = vmatmul.mubr.bf16.gmra.mrb[0].mxu0 %v514
        %v814 = vpop.f32.mrb[0].mxu0
        %v815 = vadd.f32 %v306, %v814
        %v816 = vpop.f32.mrb[0].mxu0
        %v817 = vpop.f32.mrb[0].mxu0
        %v818 = vadd.f32 %v306, %v817
        %v819 = vpop.f32.mrb[0].mxu0
        %820 = vmatprep.mubr.bf16.mxu0 %v517
        %821 = vmatmul.mubr.bf16.gmra.mrb[0].mxu0 %v516
        %v822 = vpop.f32.mrb[0].mxu0
        %v823 = vadd.f32 %v306, %v822
        %v824 = vpop.f32.mrb[0].mxu0
        %v825 = vpop.f32.mrb[0].mxu0
        %v826 = vadd.f32 %v306, %v825
        %v827 = vpop.f32.mrb[0].mxu0
        %828 = vmatprep.mubr.bf16.mxu0 %v519
        %829 = vmatmul.mubr.bf16.gmra.mrb[0].mxu0 %v518
        %v830 = vpop.f32.mrb[0].mxu0
        %v831 = vadd.f32 %v306, %v830
        %v832 = vpop.f32.mrb[0].mxu0
        %v833 = vpop.f32.mrb[0].mxu0
        %v834 = vadd.f32 %v306, %v833
        %v835 = vpop.f32.mrb[0].mxu0
        %836 = vmatprep.mubr.bf16.mxu0 %v521
        %837 = vmatmul.mubr.bf16.gmra.mrb[0].mxu0 %v520
        %v838 = vpop.f32.mrb[0].mxu0
        %v839 = vadd.f32 %v306, %v838
        %v840 = vpop.f32.mrb[0].mxu0
        %v841 = vpop.f32.mrb[0].mxu0
        %v842 = vadd.f32 %v306, %v841
        %v843 = vpop.f32.mrb[0].mxu0
        %844 = vmatprep.mubr.bf16.mxu0 %v523
        %845 = vmatmul.mubr.bf16.gmra.mrb[0].mxu0 %v522
        %v846 = vpop.f32.mrb[0].mxu0
        %v847 = vadd.f32 %v306, %v846
        %v848 = vpop.f32.mrb[0].mxu0
        %v849 = vpop.f32.mrb[0].mxu0
        %v850 = vadd.f32 %v306, %v849
        %v851 = vpop.f32.mrb[0].mxu0
        %852 = vmatprep.mubr.bf16.mxu0 %v525
        %853 = vmatmul.mubr.bf16.gmra.mrb[0].mxu0 %v524
        %v854 = vpop.f32.mrb[0].mxu0
        %v855 = vadd.f32 %v306, %v854
        %v856 = vpop.f32.mrb[0].mxu0
        %v857 = vpop.f32.mrb[0].mxu0
        %v858 = vadd.f32 %v306, %v857
        %v859 = vpop.f32.mrb[0].mxu0
        %860 = vmatprep.mubr.bf16.mxu0 %v527
        %861 = vmatmul.mubr.bf16.gmra.mrb[0].mxu0 %v526
        %v862 = vpop.f32.mrb[0].mxu0
        %v863 = vadd.f32 %v306, %v862
        %v864 = vpop.f32.mrb[0].mxu0
        %v865 = vpop.f32.mrb[0].mxu0
        %v866 = vadd.f32 %v306, %v865
        %v867 = vpop.f32.mrb[0].mxu0
        %868 = vmatprep.mubr.bf16.mxu0 %v529
        %869 = vmatmul.mubr.bf16.gmra.mrb[0].mxu0 %v528
        %v870 = vpop.f32.mrb[0].mxu0
        %v871 = vadd.f32 %v306, %v870
        %v872 = vpop.f32.mrb[0].mxu0
        %v873 = vpop.f32.mrb[0].mxu0
        %v874 = vadd.f32 %v306, %v873
        %v875 = vpop.f32.mrb[0].mxu0
        %876 = vmatprep.mubr.bf16.mxu0 %v531
        %877 = vmatmul.mubr.bf16.gmra.mrb[0].mxu0 %v530
        %v878 = vpop.f32.mrb[0].mxu0
        %v879 = vadd.f32 %v306, %v878
        %v880 = vpop.f32.mrb[0].mxu0
        %v881 = vpop.f32.mrb[0].mxu0
        %v882 = vadd.f32 %v306, %v881
        %v883 = vpop.f32.mrb[0].mxu0
        %884 = vmatprep.mubr.bf16.mxu0 %v533
        %885 = vmatmul.mubr.bf16.gmra.mrb[0].mxu0 %v532
        %v886 = vpop.f32.mrb[0].mxu0
        %v887 = vadd.f32 %v306, %v886
        %v888 = vpop.f32.mrb[0].mxu0
        %v889 = vpop.f32.mrb[0].mxu0
        %v890 = vadd.f32 %v306, %v889
        %v891 = vpop.f32.mrb[0].mxu0
        %892 = vmatprep.mubr.bf16.mxu0 %v535
        %893 = vmatmul.mubr.bf16.gmra.mrb[0].mxu0 %v534
        %v894 = vpop.f32.mrb[0].mxu0
        %v895 = vadd.f32 %v306, %v894
        %v896 = vpop.f32.mrb[0].mxu0
        %v897 = vpop.f32.mrb[0].mxu0
        %v898 = vadd.f32 %v306, %v897
        %v899 = vpop.f32.mrb[0].mxu0
        %900 = vmatprep.mubr.bf16.mxu0 %v537
        %901 = vmatmul.mubr.bf16.gmra.mrb[0].mxu0 %v536
        %v902 = vpop.f32.mrb[0].mxu0
        %v903 = vadd.f32 %v306, %v902
        %v904 = vpop.f32.mrb[0].mxu0
        %v905 = vpop.f32.mrb[0].mxu0
        %v906 = vadd.f32 %v306, %v905
        %v907 = vpop.f32.mrb[0].mxu0
        %908 = vmatprep.mubr.bf16.mxu0 %v539
        %909 = vmatmul.mubr.bf16.gmra.mrb[0].mxu0 %v538
        %v910 = vpop.f32.mrb[0].mxu0
        %v911 = vadd.f32 %v306, %v910
        %v912 = vpop.f32.mrb[0].mxu0
        %v913 = vpop.f32.mrb[0].mxu0
        %v914 = vadd.f32 %v306, %v913
        %v915 = vpop.f32.mrb[0].mxu0
        %916 = vmatprep.mubr.bf16.mxu0 %v541
        %917 = vmatmul.mubr.bf16.gmra.mrb[0].mxu0 %v540
        %v918 = vpop.f32.mrb[0].mxu0
        %v919 = vadd.f32 %v306, %v918
        %v920 = vpop.f32.mrb[0].mxu0
        %v921 = vpop.f32.mrb[0].mxu0
        %v922 = vadd.f32 %v306, %v921
        %v923 = vpop.f32.mrb[0].mxu0
        %924 = vmatprep.mubr.bf16.mxu0 %v543
        %925 = vmatmul.mubr.bf16.gmra.mrb[0].mxu0 %v542
        %v926 = vpop.f32.mrb[0].mxu0
        %v927 = vadd.f32 %v306, %v926
        %v928 = vpop.f32.mrb[0].mxu0
        %v929 = vpop.f32.mrb[0].mxu0
        %v930 = vadd.f32 %v306, %v929
        %v931 = vpop.f32.mrb[0].mxu0
        %932 = vmatprep.mubr.bf16.mxu0 %v545
        %933 = vmatmul.mubr.bf16.gmra.mrb[0].mxu0 %v544
        %v934 = vpop.f32.mrb[0].mxu0
        %v935 = vadd.f32 %v306, %v934
        %v936 = vpop.f32.mrb[0].mxu0
        %v937 = vpop.f32.mrb[0].mxu0
        %v938 = vadd.f32 %v306, %v937
        %v939 = vpop.f32.mrb[0].mxu0
        %940 = vmatprep.mubr.bf16.mxu0 %v547
        %941 = vmatmul.mubr.bf16.gmra.mrb[0].mxu0 %v546
        %v942 = vpop.f32.mrb[0].mxu0
        %v943 = vadd.f32 %v306, %v942
        %v944 = vpop.f32.mrb[0].mxu0
        %v945 = vpop.f32.mrb[0].mxu0
        %v946 = vadd.f32 %v306, %v945
        %v947 = vpop.f32.mrb[0].mxu0
        %948 = vmatprep.mubr.bf16.mxu0 %v549
        %949 = vmatmul.mubr.bf16.gmra.mrb[0].mxu0 %v548
        %v950 = vpop.f32.mrb[0].mxu0
        %v951 = vadd.f32 %v306, %v950
        %v952 = vpop.f32.mrb[0].mxu0
        %v953 = vpop.f32.mrb[0].mxu0
        %v954 = vadd.f32 %v306, %v953
        %v955 = vpop.f32.mrb[0].mxu0
        %956 = vmatprep.mubr.bf16.mxu0 %v551
        %957 = vmatmul.mubr.bf16.gmra.mrb[0].mxu0 %v550
        %v958 = vpop.f32.mrb[0].mxu0
        %v959 = vadd.f32 %v306, %v958
        %v960 = vpop.f32.mrb[0].mxu0
        %v961 = vpop.f32.mrb[0].mxu0
        %v962 = vadd.f32 %v306, %v961
        %v963 = vpop.f32.mrb[0].mxu0
        %964 = vmatprep.mubr.bf16.mxu0 %v553
        %965 = vmatmul.mubr.bf16.gmra.mrb[0].mxu0 %v552
        %v966 = vpop.f32.mrb[0].mxu0
        %v967 = vadd.f32 %v306, %v966
        %v968 = vpop.f32.mrb[0].mxu0
        %v969 = vpop.f32.mrb[0].mxu0
        %v970 = vadd.f32 %v306, %v969
        %v971 = vpop.f32.mrb[0].mxu0
        %972 = vmatprep.mubr.bf16.mxu0 %v555
        %973 = vmatmul.mubr.bf16.gmra.mrb[0].mxu0 %v554
        %v974 = vpop.f32.mrb[0].mxu0
        %v975 = vadd.f32 %v306, %v974
        %v976 = vpop.f32.mrb[0].mxu0
        %v977 = vpop.f32.mrb[0].mxu0
        %v978 = vadd.f32 %v306, %v977
        %v979 = vpop.f32.mrb[0].mxu0
        %980 = vmatprep.mubr.bf16.mxu0 %v557
        %981 = vmatmul.mubr.bf16.gmra.mrb[0].mxu0 %v556
        %v982 = vpop.f32.mrb[0].mxu0
        %v983 = vadd.f32 %v306, %v982
        %v984 = vpop.f32.mrb[0].mxu0
        %v985 = vpop.f32.mrb[0].mxu0
        %v986 = vadd.f32 %v306, %v985
        %v987 = vpop.f32.mrb[0].mxu0
        %988 = vmatprep.mubr.bf16.mxu0 %v559
        %989 = vmatmul.mubr.bf16.gmra.mrb[0].mxu0 %v558
        %v990 = vpop.f32.mrb[0].mxu0
        %v991 = vadd.f32 %v306, %v990
        %v992 = vpop.f32.mrb[0].mxu0
        %v993 = vpop.f32.mrb[0].mxu0
        %v994 = vadd.f32 %v306, %v993
        %v995 = vpop.f32.mrb[0].mxu0
        %996 = vmatprep.mubr.bf16.mxu0 %v561
        %997 = vmatmul.mubr.bf16.gmra.mrb[0].mxu0 %v560
        %v998 = vpop.f32.mrb[0].mxu0
        %v999 = vadd.f32 %v306, %v998
        %v1000 = vpop.f32.mrb[0].mxu0
        %v1001 = vpop.f32.mrb[0].mxu0
        %v1002 = vadd.f32 %v306, %v1001
        %v1003 = vpop.f32.mrb[0].mxu0
        %1004 = vmatprep.mubr.bf16.mxu0 %v563
        %1005 = vmatmul.mubr.bf16.gmra.mrb[0].mxu0 %v562
        %v1006 = vpop.f32.mrb[0].mxu0
        %v1007 = vadd.f32 %v306, %v1006
        %v1008 = vpop.f32.mrb[0].mxu0
        %v1009 = vpop.f32.mrb[0].mxu0
        %v1010 = vadd.f32 %v306, %v1009
        %v1011 = vpop.f32.mrb[0].mxu0
        %1012 = vdwg.mxu0
        %v1013 = vmax.f32 %v759, 0.0
        %v1014 = vmax.f32 %v762, 0.0
        %v1015 = vmax.f32 %v767, 0.0
        %v1016 = vmax.f32 %v770, 0.0
        %v1017 = vmax.f32 %v775, 0.0
        %v1018 = vmax.f32 %v778, 0.0
        %v1019 = vmax.f32 %v783, 0.0
        %v1020 = vmax.f32 %v786, 0.0
        %v1021 = vmax.f32 %v791, 0.0
        %v1022 = vmax.f32 %v794, 0.0
        %v1023 = vmax.f32 %v799, 0.0
        %v1024 = vmax.f32 %v802, 0.0
        %v1025 = vmax.f32 %v807, 0.0
        %v1026 = vmax.f32 %v810, 0.0
        %v1027 = vmax.f32 %v815, 0.0
        %v1028 = vmax.f32 %v818, 0.0
        %v1029 = vmax.f32 %v823, 0.0
        %v1030 = vmax.f32 %v826, 0.0
        %v1031 = vmax.f32 %v831, 0.0
        %v1032 = vmax.f32 %v834, 0.0
        %v1033 = vmax.f32 %v839, 0.0
        %v1034 = vmax.f32 %v842, 0.0
        %v1035 = vmax.f32 %v847, 0.0
        %v1036 = vmax.f32 %v850, 0.0
        %v1037 = vmax.f32 %v855, 0.0
        %v1038 = vmax.f32 %v858, 0.0
        %v1039 = vmax.f32 %v863, 0.0
        %v1040 = vmax.f32 %v866, 0.0
        %v1041 = vmax.f32 %v871, 0.0
        %v1042 = vmax.f32 %v874, 0.0
        %v1043 = vmax.f32 %v879, 0.0
        %v1044 = vmax.f32 %v882, 0.0
        %v1045 = vmax.f32 %v887, 0.0
        %v1046 = vmax.f32 %v890, 0.0
        %v1047 = vmax.f32 %v895, 0.0
        %v1048 = vmax.f32 %v898, 0.0
        %v1049 = vmax.f32 %v903, 0.0
        %v1050 = vmax.f32 %v906, 0.0
        %v1051 = vmax.f32 %v911, 0.0
        %v1052 = vmax.f32 %v914, 0.0
        %v1053 = vmax.f32 %v919, 0.0
        %v1054 = vmax.f32 %v922, 0.0
        %v1055 = vmax.f32 %v927, 0.0
        %v1056 = vmax.f32 %v930, 0.0
        %v1057 = vmax.f32 %v935, 0.0
        %v1058 = vmax.f32 %v938, 0.0
        %v1059 = vmax.f32 %v943, 0.0
        %v1060 = vmax.f32 %v946, 0.0
        %v1061 = vmax.f32 %v951, 0.0
        %v1062 = vmax.f32 %v954, 0.0
        %v1063 = vmax.f32 %v959, 0.0
        %v1064 = vmax.f32 %v962, 0.0
        %v1065 = vmax.f32 %v967, 0.0
        %v1066 = vmax.f32 %v970, 0.0
        %v1067 = vmax.f32 %v975, 0.0
        %v1068 = vmax.f32 %v978, 0.0
        %v1069 = vmax.f32 %v983, 0.0
        %v1070 = vmax.f32 %v986, 0.0
        %v1071 = vmax.f32 %v991, 0.0
        %v1072 = vmax.f32 %v994, 0.0
        %v1073 = vmax.f32 %v999, 0.0
        %v1074 = vmax.f32 %v1002, 0.0
        %v1075 = vmax.f32 %v1007, 0.0
        %v1076 = vmax.f32 %v1010, 0.0
        %v1077 = vpack.c.bf16 %v1014, %v1013
        %v1078 = vpack.c.bf16 %v1016, %v1015
        %v1079 = vpack.c.bf16 %v1018, %v1017
        %v1080 = vpack.c.bf16 %v1020, %v1019
        %v1081 = vpack.c.bf16 %v1022, %v1021
        %v1082 = vpack.c.bf16 %v1024, %v1023
        %v1083 = vpack.c.bf16 %v1026, %v1025
        %v1084 = vpack.c.bf16 %v1028, %v1027
        %v1085 = vpack.c.bf16 %v1030, %v1029
        %v1086 = vpack.c.bf16 %v1032, %v1031
        %v1087 = vpack.c.bf16 %v1034, %v1033
        %v1088 = vpack.c.bf16 %v1036, %v1035
        %v1089 = vpack.c.bf16 %v1038, %v1037
        %v1090 = vpack.c.bf16 %v1040, %v1039
        %v1091 = vpack.c.bf16 %v1042, %v1041
        %v1092 = vpack.c.bf16 %v1044, %v1043
        %v1093 = vpack.c.bf16 %v1046, %v1045
        %v1094 = vpack.c.bf16 %v1048, %v1047
        %v1095 = vpack.c.bf16 %v1050, %v1049
        %v1096 = vpack.c.bf16 %v1052, %v1051
        %v1097 = vpack.c.bf16 %v1054, %v1053
        %v1098 = vpack.c.bf16 %v1056, %v1055
        %v1099 = vpack.c.bf16 %v1058, %v1057
        %v1100 = vpack.c.bf16 %v1060, %v1059
        %v1101 = vpack.c.bf16 %v1062, %v1061
        %v1102 = vpack.c.bf16 %v1064, %v1063
        %v1103 = vpack.c.bf16 %v1066, %v1065
        %v1104 = vpack.c.bf16 %v1068, %v1067
        %v1105 = vpack.c.bf16 %v1070, %v1069
        %v1106 = vpack.c.bf16 %v1072, %v1071
        %v1107 = vpack.c.bf16 %v1074, %v1073
        %v1108 = vpack.c.bf16 %v1076, %v1075
        %v1141 = vunpack.c.l.b16 %v1077
        %v1142 = vunpack.c.h.b16 %v1077
        %v1143 = vunpack.c.l.b16 %v1078
        %v1144 = vunpack.c.h.b16 %v1078
        %v1145 = vunpack.c.l.b16 %v1079
        %v1146 = vunpack.c.h.b16 %v1079
        %v1147 = vunpack.c.l.b16 %v1080
        %v1148 = vunpack.c.h.b16 %v1080
        %v1149 = vunpack.c.l.b16 %v1081
        %v1150 = vunpack.c.h.b16 %v1081
        %v1151 = vunpack.c.l.b16 %v1082
        %v1152 = vunpack.c.h.b16 %v1082
        %v1153 = vunpack.c.l.b16 %v1083
        %v1154 = vunpack.c.h.b16 %v1083
        %v1155 = vunpack.c.l.b16 %v1084
        %v1156 = vunpack.c.h.b16 %v1084
        %v1157 = vunpack.c.l.b16 %v1085
        %v1158 = vunpack.c.h.b16 %v1085
        %v1159 = vunpack.c.l.b16 %v1086
        %v1160 = vunpack.c.h.b16 %v1086
        %v1161 = vunpack.c.l.b16 %v1087
        %v1162 = vunpack.c.h.b16 %v1087
        %v1163 = vunpack.c.l.b16 %v1088
        %v1164 = vunpack.c.h.b16 %v1088
        %v1165 = vunpack.c.l.b16 %v1089
        %v1166 = vunpack.c.h.b16 %v1089
        %v1167 = vunpack.c.l.b16 %v1090
        %v1168 = vunpack.c.h.b16 %v1090
        %v1169 = vunpack.c.l.b16 %v1091
        %v1170 = vunpack.c.h.b16 %v1091
        %v1171 = vunpack.c.l.b16 %v1092
        %v1172 = vunpack.c.h.b16 %v1092
        %v1173 = vunpack.c.l.b16 %v1093
        %v1174 = vunpack.c.h.b16 %v1093
        %v1175 = vunpack.c.l.b16 %v1094
        %v1176 = vunpack.c.h.b16 %v1094
        %v1177 = vunpack.c.l.b16 %v1095
        %v1178 = vunpack.c.h.b16 %v1095
        %v1179 = vunpack.c.l.b16 %v1096
        %v1180 = vunpack.c.h.b16 %v1096
        %v1181 = vunpack.c.l.b16 %v1097
        %v1182 = vunpack.c.h.b16 %v1097
        %v1183 = vunpack.c.l.b16 %v1098
        %v1184 = vunpack.c.h.b16 %v1098
        %v1185 = vunpack.c.l.b16 %v1099
        %v1186 = vunpack.c.h.b16 %v1099
        %v1187 = vunpack.c.l.b16 %v1100
        %v1188 = vunpack.c.h.b16 %v1100
        %v1189 = vunpack.c.l.b16 %v1101
        %v1190 = vunpack.c.h.b16 %v1101
        %v1191 = vunpack.c.l.b16 %v1102
        %v1192 = vunpack.c.h.b16 %v1102
        %v1193 = vunpack.c.l.b16 %v1103
        %v1194 = vunpack.c.h.b16 %v1103
        %v1195 = vunpack.c.l.b16 %v1104
        %v1196 = vunpack.c.h.b16 %v1104
        %v1197 = vunpack.c.l.b16 %v1105
        %v1198 = vunpack.c.h.b16 %v1105
        %v1199 = vunpack.c.l.b16 %v1106
        %v1200 = vunpack.c.h.b16 %v1106
        %v1201 = vunpack.c.l.b16 %v1107
        %v1202 = vunpack.c.h.b16 %v1107
        %v1203 = vunpack.c.l.b16 %v1108
        %v1204 = vunpack.c.h.b16 %v1108
        %v1205 = vpack.c.b16 %v1141, %v1141
        %v1206 = vpack.c.b16 %v1142, %v1142
        %v1207 = vpack.c.b16 %v1143, %v1143
        %v1208 = vpack.c.b16 %v1144, %v1144
        %v1209 = vpack.c.b16 %v1145, %v1145
        %v1210 = vpack.c.b16 %v1146, %v1146
        %v1211 = vpack.c.b16 %v1147, %v1147
        %v1212 = vpack.c.b16 %v1148, %v1148
        %v1213 = vpack.c.b16 %v1149, %v1149
        %v1214 = vpack.c.b16 %v1150, %v1150
        %v1215 = vpack.c.b16 %v1151, %v1151
        %v1216 = vpack.c.b16 %v1152, %v1152
        %v1217 = vpack.c.b16 %v1153, %v1153
        %v1218 = vpack.c.b16 %v1154, %v1154
        %v1219 = vpack.c.b16 %v1155, %v1155
        %v1220 = vpack.c.b16 %v1156, %v1156
        %v1221 = vpack.c.b16 %v1157, %v1157
        %v1222 = vpack.c.b16 %v1158, %v1158
        %v1223 = vpack.c.b16 %v1159, %v1159
        %v1224 = vpack.c.b16 %v1160, %v1160
        %v1225 = vpack.c.b16 %v1161, %v1161
        %v1226 = vpack.c.b16 %v1162, %v1162
        %v1227 = vpack.c.b16 %v1163, %v1163
        %v1228 = vpack.c.b16 %v1164, %v1164
        %v1229 = vpack.c.b16 %v1165, %v1165
        %v1230 = vpack.c.b16 %v1166, %v1166
        %v1231 = vpack.c.b16 %v1167, %v1167
        %v1232 = vpack.c.b16 %v1168, %v1168
        %v1233 = vpack.c.b16 %v1169, %v1169
        %v1234 = vpack.c.b16 %v1170, %v1170
        %v1235 = vpack.c.b16 %v1171, %v1171
        %v1236 = vpack.c.b16 %v1172, %v1172
        %v1237 = vpack.c.b16 %v1173, %v1173
        %v1238 = vpack.c.b16 %v1174, %v1174
        %v1239 = vpack.c.b16 %v1175, %v1175
        %v1240 = vpack.c.b16 %v1176, %v1176
        %v1241 = vpack.c.b16 %v1177, %v1177
        %v1242 = vpack.c.b16 %v1178, %v1178
        %v1243 = vpack.c.b16 %v1179, %v1179
        %v1244 = vpack.c.b16 %v1180, %v1180
        %v1245 = vpack.c.b16 %v1181, %v1181
        %v1246 = vpack.c.b16 %v1182, %v1182
        %v1247 = vpack.c.b16 %v1183, %v1183
        %v1248 = vpack.c.b16 %v1184, %v1184
        %v1249 = vpack.c.b16 %v1185, %v1185
        %v1250 = vpack.c.b16 %v1186, %v1186
        %v1251 = vpack.c.b16 %v1187, %v1187
        %v1252 = vpack.c.b16 %v1188, %v1188
        %v1253 = vpack.c.b16 %v1189, %v1189
        %v1254 = vpack.c.b16 %v1190, %v1190
        %v1255 = vpack.c.b16 %v1191, %v1191
        %v1256 = vpack.c.b16 %v1192, %v1192
        %v1257 = vpack.c.b16 %v1193, %v1193
        %v1258 = vpack.c.b16 %v1194, %v1194
        %v1259 = vpack.c.b16 %v1195, %v1195
        %v1260 = vpack.c.b16 %v1196, %v1196
        %v1261 = vpack.c.b16 %v1197, %v1197
        %v1262 = vpack.c.b16 %v1198, %v1198
        %v1263 = vpack.c.b16 %v1199, %v1199
        %v1264 = vpack.c.b16 %v1200, %v1200
        %v1265 = vpack.c.b16 %v1201, %v1201
        %v1266 = vpack.c.b16 %v1202, %v1202
        %v1267 = vpack.c.b16 %v1203, %v1203
        %v1268 = vpack.c.b16 %v1204, %v1204
        %vm1333 = vcmask 257024
        %1334 = vst.msk [vmem:[%s192] sm:$0xf] %vm1333, %v1205
        %1335 = vst.msk [vmem:[%s192 + $0x4] sm:$0xf] %vm1333, %v1206
        %1336 = vst.msk [vmem:[%s192 + $0x8] sm:$0xf] %vm1333, %v1207
        %1337 = vst.msk [vmem:[%s192 + $0xc] sm:$0xf] %vm1333, %v1208
        %1338 = vst.msk [vmem:[%s192 + $0x10] sm:$0xf] %vm1333, %v1209
        %1339 = vst.msk [vmem:[%s192 + $0x14] sm:$0xf] %vm1333, %v1210
        %1340 = vst.msk [vmem:[%s192 + $0x18] sm:$0xf] %vm1333, %v1211
        %1341 = vst.msk [vmem:[%s192 + $0x1c] sm:$0xf] %vm1333, %v1212
        %1342 = vst.msk [vmem:[%s192 + $0x20] sm:$0xf] %vm1333, %v1213
        %1343 = vst.msk [vmem:[%s192 + $0x24] sm:$0xf] %vm1333, %v1214
        %1344 = vst.msk [vmem:[%s192 + $0x28] sm:$0xf] %vm1333, %v1215
        %1345 = vst.msk [vmem:[%s192 + $0x2c] sm:$0xf] %vm1333, %v1216
        %1346 = vst.msk [vmem:[%s192 + $0x30] sm:$0xf] %vm1333, %v1217
        %1347 = vst.msk [vmem:[%s192 + $0x34] sm:$0xf] %vm1333, %v1218
        %1348 = vst.msk [vmem:[%s192 + $0x38] sm:$0xf] %vm1333, %v1219
        %1349 = vst.msk [vmem:[%s192 + $0x3c] sm:$0xf] %vm1333, %v1220
        %1350 = vst.msk [vmem:[%s192 + $0x40] sm:$0xf] %vm1333, %v1221
        %1351 = vst.msk [vmem:[%s192 + $0x44] sm:$0xf] %vm1333, %v1222
        %1352 = vst.msk [vmem:[%s192 + $0x48] sm:$0xf] %vm1333, %v1223
        %1353 = vst.msk [vmem:[%s192 + $0x4c] sm:$0xf] %vm1333, %v1224
        %1354 = vst.msk [vmem:[%s192 + $0x50] sm:$0xf] %vm1333, %v1225
        %1355 = vst.msk [vmem:[%s192 + $0x54] sm:$0xf] %vm1333, %v1226
        %1356 = vst.msk [vmem:[%s192 + $0x58] sm:$0xf] %vm1333, %v1227
        %1357 = vst.msk [vmem:[%s192 + $0x5c] sm:$0xf] %vm1333, %v1228
        %1358 = vst.msk [vmem:[%s192 + $0x60] sm:$0xf] %vm1333, %v1229
        %1359 = vst.msk [vmem:[%s192 + $0x64] sm:$0xf] %vm1333, %v1230
        %1360 = vst.msk [vmem:[%s192 + $0x68] sm:$0xf] %vm1333, %v1231
        %1361 = vst.msk [vmem:[%s192 + $0x6c] sm:$0xf] %vm1333, %v1232
        %1362 = vst.msk [vmem:[%s192 + $0x70] sm:$0xf] %vm1333, %v1233
        %1363 = vst.msk [vmem:[%s192 + $0x74] sm:$0xf] %vm1333, %v1234
        %1364 = vst.msk [vmem:[%s192 + $0x78] sm:$0xf] %vm1333, %v1235
        %1365 = vst.msk [vmem:[%s192 + $0x7c] sm:$0xf] %vm1333, %v1236
        %1366 = vst.msk [vmem:[%s192 + $0x80] sm:$0xf] %vm1333, %v1237
        %1367 = vst.msk [vmem:[%s192 + $0x84] sm:$0xf] %vm1333, %v1238
        %1368 = vst.msk [vmem:[%s192 + $0x88] sm:$0xf] %vm1333, %v1239
        %1369 = vst.msk [vmem:[%s192 + $0x8c] sm:$0xf] %vm1333, %v1240
        %1370 = vst.msk [vmem:[%s192 + $0x90] sm:$0xf] %vm1333, %v1241
        %1371 = vst.msk [vmem:[%s192 + $0x94] sm:$0xf] %vm1333, %v1242
        %1372 = vst.msk [vmem:[%s192 + $0x98] sm:$0xf] %vm1333, %v1243
        %1373 = vst.msk [vmem:[%s192 + $0x9c] sm:$0xf] %vm1333, %v1244
        %1374 = vst.msk [vmem:[%s192 + $0xa0] sm:$0xf] %vm1333, %v1245
        %1375 = vst.msk [vmem:[%s192 + $0xa4] sm:$0xf] %vm1333, %v1246
        %1376 = vst.msk [vmem:[%s192 + $0xa8] sm:$0xf] %vm1333, %v1247
        %1377 = vst.msk [vmem:[%s192 + $0xac] sm:$0xf] %vm1333, %v1248
        %1378 = vst.msk [vmem:[%s192 + $0xb0] sm:$0xf] %vm1333, %v1249
        %1379 = vst.msk [vmem:[%s192 + $0xb4] sm:$0xf] %vm1333, %v1250
        %1380 = vst.msk [vmem:[%s192 + $0xb8] sm:$0xf] %vm1333, %v1251
        %1381 = vst.msk [vmem:[%s192 + $0xbc] sm:$0xf] %vm1333, %v1252
        %1382 = vst.msk [vmem:[%s192 + $0xc0] sm:$0xf] %vm1333, %v1253
        %1383 = vst.msk [vmem:[%s192 + $0xc4] sm:$0xf] %vm1333, %v1254
        %1384 = vst.msk [vmem:[%s192 + $0xc8] sm:$0xf] %vm1333, %v1255
        %1385 = vst.msk [vmem:[%s192 + $0xcc] sm:$0xf] %vm1333, %v1256
        %1386 = vst.msk [vmem:[%s192 + $0xd0] sm:$0xf] %vm1333, %v1257
        %1387 = vst.msk [vmem:[%s192 + $0xd4] sm:$0xf] %vm1333, %v1258
        %1388 = vst.msk [vmem:[%s192 + $0xd8] sm:$0xf] %vm1333, %v1259
        %1389 = vst.msk [vmem:[%s192 + $0xdc] sm:$0xf] %vm1333, %v1260
        %1390 = vst.msk [vmem:[%s192 + $0xe0] sm:$0xf] %vm1333, %v1261
        %1391 = vst.msk [vmem:[%s192 + $0xe4] sm:$0xf] %vm1333, %v1262
        %1392 = vst.msk [vmem:[%s192 + $0xe8] sm:$0xf] %vm1333, %v1263
        %1393 = vst.msk [vmem:[%s192 + $0xec] sm:$0xf] %vm1333, %v1264
        %1394 = vst.msk [vmem:[%s192 + $0xf0] sm:$0xf] %vm1333, %v1265
        %1395 = vst.msk [vmem:[%s192 + $0xf4] sm:$0xf] %vm1333, %v1266
        %1396 = vst.msk [vmem:[%s192 + $0xf8] sm:$0xf] %vm1333, %v1267
        %1397 = vst.msk [vmem:[%s192 + $0xfc] sm:$0xf] %vm1333, %v1268
        %s1398 = sand.u32 %s93, 1
        %s1399 = sand.u32 %s93, 1
        %s1400 = smul.addr %s1399, 256
        %s1401 = scalar_lea.vmem [#allocation4], %s1400
        // Predicated region
        $region37: #{tpu_custom_call.1} parent=31 // pred_check
          %p1402 = pneg %p103
        $region38: #{tpu_custom_call.1} parent=31 // pred_check_branch
          %1404 = sbr.rel (%p1402) target = $region40
        $region39: #{tpu_custom_call.1} parent=31 // pred_region
          %s1405 = smul.u32 64, %s17
          %s1406 = ssub.s32 100, %s1405
          %p1407 = scmp.lt.s32.totalorder %s1406, 64
          %s1408 = scalar_select %p1407, %s1406, 64
          %s1409 = smul.u32 64, %s1408
          %p1410 = scmp.ne.s32.totalorder 0, %s1409
          %s1411 = smul.addr %s1405, 4
          %s1412 = scalar_lea.vmem %s3, %s1411
          // Predicated region
          $region41: #{tpu_custom_call.1} parent=39 // pred_check
            %p1413 = pneg %p1410
          $region42: #{tpu_custom_call.1} parent=39 // pred_check_branch
            %1415 = sbr.rel (%p1413) target = $region44
          $region43: #{tpu_custom_call.1} parent=39 // pred_region
            // Predicated region
            $region45: #{tpu_custom_call.1} parent=43 // pred_check
              _
            $region46: #{tpu_custom_call.1} parent=43 // pred_check_branch
              %1417 = sbr.rel target = $region48
            $region47: #{tpu_custom_call.1} parent=43 // pred_region
              // Predicated region
              $region67: #{tpu_custom_call.1} parent=47 // pred_check
                _
              $region68: #{tpu_custom_call.1} parent=47 // pred_check_branch
                %1592 = sbr.rel (0) target = $region70
              $region69: #{tpu_custom_call.1} parent=47 // pred_region
                %s1594 = sshrl.u32 %s1408, 6
                // While loop
                $region71: #{tpu_custom_call.1} parent=69 // loop_pre_header
                  _
                $region72: #{tpu_custom_call.1} parent=69 // loop_header
                  %s1596 = sphi 0, %s1598
                  %p1597 = scmp.ge.s32.totalorder %s1596, %s1594
                  %s1601 = sphi 0, %s1734
                  %s1602 = sphi %s1401, %s1737
                  %s1603 = sphi %s1412, %s1738
                $region73: #{tpu_custom_call.1} parent=69 // loop_header_branch
                  %1600 = sbr.rel (%p1597) target = $region77
                $region74: #{tpu_custom_call.1} parent=69 // loop_body
                  %v1604 = vld [vmem:[%s1602] sm:$0xf]
                  %1605 = vst [vmem:[%s1603] sm:$0xf] %v1604
                  %v1606 = vld [vmem:[%s1602 + $0x4] sm:$0xf]
                  %1607 = vst [vmem:[%s1603 + $0x4] sm:$0xf] %v1606
                  %v1608 = vld [vmem:[%s1602 + $0x8] sm:$0xf]
                  %1609 = vst [vmem:[%s1603 + $0x8] sm:$0xf] %v1608
                  %v1610 = vld [vmem:[%s1602 + $0xc] sm:$0xf]
                  %1611 = vst [vmem:[%s1603 + $0xc] sm:$0xf] %v1610
                  %v1612 = vld [vmem:[%s1602 + $0x10] sm:$0xf]
                  %1613 = vst [vmem:[%s1603 + $0x10] sm:$0xf] %v1612
                  %v1614 = vld [vmem:[%s1602 + $0x14] sm:$0xf]
                  %1615 = vst [vmem:[%s1603 + $0x14] sm:$0xf] %v1614
                  %v1616 = vld [vmem:[%s1602 + $0x18] sm:$0xf]
                  %1617 = vst [vmem:[%s1603 + $0x18] sm:$0xf] %v1616
                  %v1618 = vld [vmem:[%s1602 + $0x1c] sm:$0xf]
                  %1619 = vst [vmem:[%s1603 + $0x1c] sm:$0xf] %v1618
                  %v1620 = vld [vmem:[%s1602 + $0x20] sm:$0xf]
                  %1621 = vst [vmem:[%s1603 + $0x20] sm:$0xf] %v1620
                  %v1622 = vld [vmem:[%s1602 + $0x24] sm:$0xf]
                  %1623 = vst [vmem:[%s1603 + $0x24] sm:$0xf] %v1622
                  %v1624 = vld [vmem:[%s1602 + $0x28] sm:$0xf]
                  %1625 = vst [vmem:[%s1603 + $0x28] sm:$0xf] %v1624
                  %v1626 = vld [vmem:[%s1602 + $0x2c] sm:$0xf]
                  %1627 = vst [vmem:[%s1603 + $0x2c] sm:$0xf] %v1626
                  %v1628 = vld [vmem:[%s1602 + $0x30] sm:$0xf]
                  %1629 = vst [vmem:[%s1603 + $0x30] sm:$0xf] %v1628
                  %v1630 = vld [vmem:[%s1602 + $0x34] sm:$0xf]
                  %1631 = vst [vmem:[%s1603 + $0x34] sm:$0xf] %v1630
                  %v1632 = vld [vmem:[%s1602 + $0x38] sm:$0xf]
                  %1633 = vst [vmem:[%s1603 + $0x38] sm:$0xf] %v1632
                  %v1634 = vld [vmem:[%s1602 + $0x3c] sm:$0xf]
                  %1635 = vst [vmem:[%s1603 + $0x3c] sm:$0xf] %v1634
                  %v1636 = vld [vmem:[%s1602 + $0x40] sm:$0xf]
                  %1637 = vst [vmem:[%s1603 + $0x40] sm:$0xf] %v1636
                  %v1638 = vld [vmem:[%s1602 + $0x44] sm:$0xf]
                  %1639 = vst [vmem:[%s1603 + $0x44] sm:$0xf] %v1638
                  %v1640 = vld [vmem:[%s1602 + $0x48] sm:$0xf]
                  %1641 = vst [vmem:[%s1603 + $0x48] sm:$0xf] %v1640
                  %v1642 = vld [vmem:[%s1602 + $0x4c] sm:$0xf]
                  %1643 = vst [vmem:[%s1603 + $0x4c] sm:$0xf] %v1642
                  %v1644 = vld [vmem:[%s1602 + $0x50] sm:$0xf]
                  %1645 = vst [vmem:[%s1603 + $0x50] sm:$0xf] %v1644
                  %v1646 = vld [vmem:[%s1602 + $0x54] sm:$0xf]
                  %1647 = vst [vmem:[%s1603 + $0x54] sm:$0xf] %v1646
                  %v1648 = vld [vmem:[%s1602 + $0x58] sm:$0xf]
                  %1649 = vst [vmem:[%s1603 + $0x58] sm:$0xf] %v1648
                  %v1650 = vld [vmem:[%s1602 + $0x5c] sm:$0xf]
                  %1651 = vst [vmem:[%s1603 + $0x5c] sm:$0xf] %v1650
                  %v1652 = vld [vmem:[%s1602 + $0x60] sm:$0xf]
                  %1653 = vst [vmem:[%s1603 + $0x60] sm:$0xf] %v1652
                  %v1654 = vld [vmem:[%s1602 + $0x64] sm:$0xf]
                  %1655 = vst [vmem:[%s1603 + $0x64] sm:$0xf] %v1654
                  %v1656 = vld [vmem:[%s1602 + $0x68] sm:$0xf]
                  %1657 = vst [vmem:[%s1603 + $0x68] sm:$0xf] %v1656
                  %v1658 = vld [vmem:[%s1602 + $0x6c] sm:$0xf]
                  %1659 = vst [vmem:[%s1603 + $0x6c] sm:$0xf] %v1658
                  %v1660 = vld [vmem:[%s1602 + $0x70] sm:$0xf]
                  %1661 = vst [vmem:[%s1603 + $0x70] sm:$0xf] %v1660
                  %v1662 = vld [vmem:[%s1602 + $0x74] sm:$0xf]
                  %1663 = vst [vmem:[%s1603 + $0x74] sm:$0xf] %v1662
                  %v1664 = vld [vmem:[%s1602 + $0x78] sm:$0xf]
                  %1665 = vst [vmem:[%s1603 + $0x78] sm:$0xf] %v1664
                  %v1666 = vld [vmem:[%s1602 + $0x7c] sm:$0xf]
                  %1667 = vst [vmem:[%s1603 + $0x7c] sm:$0xf] %v1666
                  %v1668 = vld [vmem:[%s1602 + $0x80] sm:$0xf]
                  %1669 = vst [vmem:[%s1603 + $0x80] sm:$0xf] %v1668
                  %v1670 = vld [vmem:[%s1602 + $0x84] sm:$0xf]
                  %1671 = vst [vmem:[%s1603 + $0x84] sm:$0xf] %v1670
                  %v1672 = vld [vmem:[%s1602 + $0x88] sm:$0xf]
                  %1673 = vst [vmem:[%s1603 + $0x88] sm:$0xf] %v1672
                  %v1674 = vld [vmem:[%s1602 + $0x8c] sm:$0xf]
                  %1675 = vst [vmem:[%s1603 + $0x8c] sm:$0xf] %v1674
                  %v1676 = vld [vmem:[%s1602 + $0x90] sm:$0xf]
                  %1677 = vst [vmem:[%s1603 + $0x90] sm:$0xf] %v1676
                  %v1678 = vld [vmem:[%s1602 + $0x94] sm:$0xf]
                  %1679 = vst [vmem:[%s1603 + $0x94] sm:$0xf] %v1678
                  %v1680 = vld [vmem:[%s1602 + $0x98] sm:$0xf]
                  %1681 = vst [vmem:[%s1603 + $0x98] sm:$0xf] %v1680
                  %v1682 = vld [vmem:[%s1602 + $0x9c] sm:$0xf]
                  %1683 = vst [vmem:[%s1603 + $0x9c] sm:$0xf] %v1682
                  %v1684 = vld [vmem:[%s1602 + $0xa0] sm:$0xf]
                  %1685 = vst [vmem:[%s1603 + $0xa0] sm:$0xf] %v1684
                  %v1686 = vld [vmem:[%s1602 + $0xa4] sm:$0xf]
                  %1687 = vst [vmem:[%s1603 + $0xa4] sm:$0xf] %v1686
                  %v1688 = vld [vmem:[%s1602 + $0xa8] sm:$0xf]
                  %1689 = vst [vmem:[%s1603 + $0xa8] sm:$0xf] %v1688
                  %v1690 = vld [vmem:[%s1602 + $0xac] sm:$0xf]
                  %1691 = vst [vmem:[%s1603 + $0xac] sm:$0xf] %v1690
                  %v1692 = vld [vmem:[%s1602 + $0xb0] sm:$0xf]
                  %1693 = vst [vmem:[%s1603 + $0xb0] sm:$0xf] %v1692
                  %v1694 = vld [vmem:[%s1602 + $0xb4] sm:$0xf]
                  %1695 = vst [vmem:[%s1603 + $0xb4] sm:$0xf] %v1694
                  %v1696 = vld [vmem:[%s1602 + $0xb8] sm:$0xf]
                  %1697 = vst [vmem:[%s1603 + $0xb8] sm:$0xf] %v1696
                  %v1698 = vld [vmem:[%s1602 + $0xbc] sm:$0xf]
                  %1699 = vst [vmem:[%s1603 + $0xbc] sm:$0xf] %v1698
                  %v1700 = vld [vmem:[%s1602 + $0xc0] sm:$0xf]
                  %1701 = vst [vmem:[%s1603 + $0xc0] sm:$0xf] %v1700
                  %v1702 = vld [vmem:[%s1602 + $0xc4] sm:$0xf]
                  %1703 = vst [vmem:[%s1603 + $0xc4] sm:$0xf] %v1702
                  %v1704 = vld [vmem:[%s1602 + $0xc8] sm:$0xf]
                  %1705 = vst [vmem:[%s1603 + $0xc8] sm:$0xf] %v1704
                  %v1706 = vld [vmem:[%s1602 + $0xcc] sm:$0xf]
                  %1707 = vst [vmem:[%s1603 + $0xcc] sm:$0xf] %v1706
                  %v1708 = vld [vmem:[%s1602 + $0xd0] sm:$0xf]
                  %1709 = vst [vmem:[%s1603 + $0xd0] sm:$0xf] %v1708
                  %v1710 = vld [vmem:[%s1602 + $0xd4] sm:$0xf]
                  %1711 = vst [vmem:[%s1603 + $0xd4] sm:$0xf] %v1710
                  %v1712 = vld [vmem:[%s1602 + $0xd8] sm:$0xf]
                  %1713 = vst [vmem:[%s1603 + $0xd8] sm:$0xf] %v1712
                  %v1714 = vld [vmem:[%s1602 + $0xdc] sm:$0xf]
                  %1715 = vst [vmem:[%s1603 + $0xdc] sm:$0xf] %v1714
                  %v1716 = vld [vmem:[%s1602 + $0xe0] sm:$0xf]
                  %1717 = vst [vmem:[%s1603 + $0xe0] sm:$0xf] %v1716
                  %v1718 = vld [vmem:[%s1602 + $0xe4] sm:$0xf]
                  %1719 = vst [vmem:[%s1603 + $0xe4] sm:$0xf] %v1718
                  %v1720 = vld [vmem:[%s1602 + $0xe8] sm:$0xf]
                  %1721 = vst [vmem:[%s1603 + $0xe8] sm:$0xf] %v1720
                  %v1722 = vld [vmem:[%s1602 + $0xec] sm:$0xf]
                  %1723 = vst [vmem:[%s1603 + $0xec] sm:$0xf] %v1722
                  %v1724 = vld [vmem:[%s1602 + $0xf0] sm:$0xf]
                  %1725 = vst [vmem:[%s1603 + $0xf0] sm:$0xf] %v1724
                  %v1726 = vld [vmem:[%s1602 + $0xf4] sm:$0xf]
                  %1727 = vst [vmem:[%s1603 + $0xf4] sm:$0xf] %v1726
                  %v1728 = vld [vmem:[%s1602 + $0xf8] sm:$0xf]
                  %1729 = vst [vmem:[%s1603 + $0xf8] sm:$0xf] %v1728
                  %v1730 = vld [vmem:[%s1602 + $0xfc] sm:$0xf]
                  %1731 = vst [vmem:[%s1603 + $0xfc] sm:$0xf] %v1730
                  %s1732 = sadd.s32 1, %s1601
                  %p1733 = scmp.ge.s32.totalorder %s1732, %s1594
                  %s1734 = scalar_select %p1733, 0, %s1732
                  %s1735 = smul.u32 %s1734, 256
                  %s1736 = smul.u32 %s1734, 256
                  %s1737 = scalar_lea.vmem %s1401, %s1735 [#allocation4]
                  %s1738 = scalar_lea.vmem %s1412, %s1736
                $region75: #{tpu_custom_call.1} parent=69 // loop_footer
                  %s1598 = sadd.s32 %s1596, 1
                $region76: #{tpu_custom_call.1} parent=69 // loop_footer_branch
                  %1595 = sbr.rel target = $region72
                $region77: #{tpu_custom_call.1} parent=69 // loop_exit
                  _
                %s1739 = sshrl.u32 %s1408, 6
                %s1740 = sand.u32 %s1408, 63
                %s1741 = smul.u32 %s1739, 64
                %s1742 = smul.u32 4, %s1741
                %s1743 = scalar_lea.vmem %s1401, %s1742 [#allocation4]
                %s1744 = smul.u32 4, %s1741
                %s1745 = scalar_lea.vmem %s1412, %s1744
                // While loop
                $region78: #{tpu_custom_call.1} parent=69 // loop_pre_header
                  _
                $region79: #{tpu_custom_call.1} parent=69 // loop_header
                  %s1747 = sphi 0, %s1749
                  %p1748 = scmp.ge.s32.totalorder %s1747, %s1740
                  %s1752 = sphi 0, %s1759
                  %s1753 = sphi %s1743, %s1762
                  %s1754 = sphi %s1745, %s1763
                $region80: #{tpu_custom_call.1} parent=69 // loop_header_branch
                  %1751 = sbr.rel (%p1748) target = $region84
                $region81: #{tpu_custom_call.1} parent=69 // loop_body
                  %v1755 = vld [vmem:[%s1753] sm:$0xf]
                  %1756 = vst [vmem:[%s1754] sm:$0xf] %v1755
                  %s1757 = sadd.s32 1, %s1752
                  %p1758 = scmp.ge.s32.totalorder %s1757, %s1740
                  %s1759 = scalar_select %p1758, 0, %s1757
                  %s1760 = smul.u32 %s1759, 4
                  %s1761 = smul.u32 %s1759, 4
                  %s1762 = scalar_lea.vmem %s1743, %s1760 [#allocation4]
                  %s1763 = scalar_lea.vmem %s1745, %s1761
                $region82: #{tpu_custom_call.1} parent=69 // loop_footer
                  %s1749 = sadd.s32 %s1747, 1
                $region83: #{tpu_custom_call.1} parent=69 // loop_footer_branch
                  %1746 = sbr.rel target = $region79
                $region84: #{tpu_custom_call.1} parent=69 // loop_exit
                  _
              $region70: #{tpu_custom_call.1} parent=47 // pred_fallthru
                _
            $region48: #{tpu_custom_call.1} parent=43 // pred_fallthru
              _
            // Predicated region
            $region49: #{tpu_custom_call.1} parent=43 // pred_check
              _
            $region50: #{tpu_custom_call.1} parent=43 // pred_check_branch
              %1419 = sbr.rel (0) target = $region52
            $region51: #{tpu_custom_call.1} parent=43 // pred_region
              %s1421 = sshrl.u32 %s1408, 6
              // While loop
              $region53: #{tpu_custom_call.1} parent=51 // loop_pre_header
                _
              $region54: #{tpu_custom_call.1} parent=51 // loop_header
                %s1423 = sphi 0, %s1425
                %p1424 = scmp.ge.s32.totalorder %s1423, %s1421
                %s1428 = sphi 0, %s1561
                %s1429 = sphi %s1401, %s1564
                %s1430 = sphi %s1412, %s1565
              $region55: #{tpu_custom_call.1} parent=51 // loop_header_branch
                %1427 = sbr.rel (%p1424) target = $region59
              $region56: #{tpu_custom_call.1} parent=51 // loop_body
                %v1431 = vld [vmem:[%s1429] sm:$0xf]
                %1432 = vst [vmem:[%s1430] sm:$0xf] %v1431
                %v1433 = vld [vmem:[%s1429 + $0x4] sm:$0xf]
                %1434 = vst [vmem:[%s1430 + $0x4] sm:$0xf] %v1433
                %v1435 = vld [vmem:[%s1429 + $0x8] sm:$0xf]
                %1436 = vst [vmem:[%s1430 + $0x8] sm:$0xf] %v1435
                %v1437 = vld [vmem:[%s1429 + $0xc] sm:$0xf]
                %1438 = vst [vmem:[%s1430 + $0xc] sm:$0xf] %v1437
                %v1439 = vld [vmem:[%s1429 + $0x10] sm:$0xf]
                %1440 = vst [vmem:[%s1430 + $0x10] sm:$0xf] %v1439
                %v1441 = vld [vmem:[%s1429 + $0x14] sm:$0xf]
                %1442 = vst [vmem:[%s1430 + $0x14] sm:$0xf] %v1441
                %v1443 = vld [vmem:[%s1429 + $0x18] sm:$0xf]
                %1444 = vst [vmem:[%s1430 + $0x18] sm:$0xf] %v1443
                %v1445 = vld [vmem:[%s1429 + $0x1c] sm:$0xf]
                %1446 = vst [vmem:[%s1430 + $0x1c] sm:$0xf] %v1445
                %v1447 = vld [vmem:[%s1429 + $0x20] sm:$0xf]
                %1448 = vst [vmem:[%s1430 + $0x20] sm:$0xf] %v1447
                %v1449 = vld [vmem:[%s1429 + $0x24] sm:$0xf]
                %1450 = vst [vmem:[%s1430 + $0x24] sm:$0xf] %v1449
                %v1451 = vld [vmem:[%s1429 + $0x28] sm:$0xf]
                %1452 = vst [vmem:[%s1430 + $0x28] sm:$0xf] %v1451
                %v1453 = vld [vmem:[%s1429 + $0x2c] sm:$0xf]
                %1454 = vst [vmem:[%s1430 + $0x2c] sm:$0xf] %v1453
                %v1455 = vld [vmem:[%s1429 + $0x30] sm:$0xf]
                %1456 = vst [vmem:[%s1430 + $0x30] sm:$0xf] %v1455
                %v1457 = vld [vmem:[%s1429 + $0x34] sm:$0xf]
                %1458 = vst [vmem:[%s1430 + $0x34] sm:$0xf] %v1457
                %v1459 = vld [vmem:[%s1429 + $0x38] sm:$0xf]
                %1460 = vst [vmem:[%s1430 + $0x38] sm:$0xf] %v1459
                %v1461 = vld [vmem:[%s1429 + $0x3c] sm:$0xf]
                %1462 = vst [vmem:[%s1430 + $0x3c] sm:$0xf] %v1461
                %v1463 = vld [vmem:[%s1429 + $0x40] sm:$0xf]
                %1464 = vst [vmem:[%s1430 + $0x40] sm:$0xf] %v1463
                %v1465 = vld [vmem:[%s1429 + $0x44] sm:$0xf]
                %1466 = vst [vmem:[%s1430 + $0x44] sm:$0xf] %v1465
                %v1467 = vld [vmem:[%s1429 + $0x48] sm:$0xf]
                %1468 = vst [vmem:[%s1430 + $0x48] sm:$0xf] %v1467
                %v1469 = vld [vmem:[%s1429 + $0x4c] sm:$0xf]
                %1470 = vst [vmem:[%s1430 + $0x4c] sm:$0xf] %v1469
                %v1471 = vld [vmem:[%s1429 + $0x50] sm:$0xf]
                %1472 = vst [vmem:[%s1430 + $0x50] sm:$0xf] %v1471
                %v1473 = vld [vmem:[%s1429 + $0x54] sm:$0xf]
                %1474 = vst [vmem:[%s1430 + $0x54] sm:$0xf] %v1473
                %v1475 = vld [vmem:[%s1429 + $0x58] sm:$0xf]
                %1476 = vst [vmem:[%s1430 + $0x58] sm:$0xf] %v1475
                %v1477 = vld [vmem:[%s1429 + $0x5c] sm:$0xf]
                %1478 = vst [vmem:[%s1430 + $0x5c] sm:$0xf] %v1477
                %v1479 = vld [vmem:[%s1429 + $0x60] sm:$0xf]
                %1480 = vst [vmem:[%s1430 + $0x60] sm:$0xf] %v1479
                %v1481 = vld [vmem:[%s1429 + $0x64] sm:$0xf]
                %1482 = vst [vmem:[%s1430 + $0x64] sm:$0xf] %v1481
                %v1483 = vld [vmem:[%s1429 + $0x68] sm:$0xf]
                %1484 = vst [vmem:[%s1430 + $0x68] sm:$0xf] %v1483
                %v1485 = vld [vmem:[%s1429 + $0x6c] sm:$0xf]
                %1486 = vst [vmem:[%s1430 + $0x6c] sm:$0xf] %v1485
                %v1487 = vld [vmem:[%s1429 + $0x70] sm:$0xf]
                %1488 = vst [vmem:[%s1430 + $0x70] sm:$0xf] %v1487
                %v1489 = vld [vmem:[%s1429 + $0x74] sm:$0xf]
                %1490 = vst [vmem:[%s1430 + $0x74] sm:$0xf] %v1489
                %v1491 = vld [vmem:[%s1429 + $0x78] sm:$0xf]
                %1492 = vst [vmem:[%s1430 + $0x78] sm:$0xf] %v1491
                %v1493 = vld [vmem:[%s1429 + $0x7c] sm:$0xf]
                %1494 = vst [vmem:[%s1430 + $0x7c] sm:$0xf] %v1493
                %v1495 = vld [vmem:[%s1429 + $0x80] sm:$0xf]
                %1496 = vst [vmem:[%s1430 + $0x80] sm:$0xf] %v1495
                %v1497 = vld [vmem:[%s1429 + $0x84] sm:$0xf]
                %1498 = vst [vmem:[%s1430 + $0x84] sm:$0xf] %v1497
                %v1499 = vld [vmem:[%s1429 + $0x88] sm:$0xf]
                %1500 = vst [vmem:[%s1430 + $0x88] sm:$0xf] %v1499
                %v1501 = vld [vmem:[%s1429 + $0x8c] sm:$0xf]
                %1502 = vst [vmem:[%s1430 + $0x8c] sm:$0xf] %v1501
                %v1503 = vld [vmem:[%s1429 + $0x90] sm:$0xf]
                %1504 = vst [vmem:[%s1430 + $0x90] sm:$0xf] %v1503
                %v1505 = vld [vmem:[%s1429 + $0x94] sm:$0xf]
                %1506 = vst [vmem:[%s1430 + $0x94] sm:$0xf] %v1505
                %v1507 = vld [vmem:[%s1429 + $0x98] sm:$0xf]
                %1508 = vst [vmem:[%s1430 + $0x98] sm:$0xf] %v1507
                %v1509 = vld [vmem:[%s1429 + $0x9c] sm:$0xf]
                %1510 = vst [vmem:[%s1430 + $0x9c] sm:$0xf] %v1509
                %v1511 = vld [vmem:[%s1429 + $0xa0] sm:$0xf]
                %1512 = vst [vmem:[%s1430 + $0xa0] sm:$0xf] %v1511
                %v1513 = vld [vmem:[%s1429 + $0xa4] sm:$0xf]
                %1514 = vst [vmem:[%s1430 + $0xa4] sm:$0xf] %v1513
                %v1515 = vld [vmem:[%s1429 + $0xa8] sm:$0xf]
                %1516 = vst [vmem:[%s1430 + $0xa8] sm:$0xf] %v1515
                %v1517 = vld [vmem:[%s1429 + $0xac] sm:$0xf]
                %1518 = vst [vmem:[%s1430 + $0xac] sm:$0xf] %v1517
                %v1519 = vld [vmem:[%s1429 + $0xb0] sm:$0xf]
                %1520 = vst [vmem:[%s1430 + $0xb0] sm:$0xf] %v1519
                %v1521 = vld [vmem:[%s1429 + $0xb4] sm:$0xf]
                %1522 = vst [vmem:[%s1430 + $0xb4] sm:$0xf] %v1521
                %v1523 = vld [vmem:[%s1429 + $0xb8] sm:$0xf]
                %1524 = vst [vmem:[%s1430 + $0xb8] sm:$0xf] %v1523
                %v1525 = vld [vmem:[%s1429 + $0xbc] sm:$0xf]
                %1526 = vst [vmem:[%s1430 + $0xbc] sm:$0xf] %v1525
                %v1527 = vld [vmem:[%s1429 + $0xc0] sm:$0xf]
                %1528 = vst [vmem:[%s1430 + $0xc0] sm:$0xf] %v1527
                %v1529 = vld [vmem:[%s1429 + $0xc4] sm:$0xf]
                %1530 = vst [vmem:[%s1430 + $0xc4] sm:$0xf] %v1529
                %v1531 = vld [vmem:[%s1429 + $0xc8] sm:$0xf]
                %1532 = vst [vmem:[%s1430 + $0xc8] sm:$0xf] %v1531
                %v1533 = vld [vmem:[%s1429 + $0xcc] sm:$0xf]
                %1534 = vst [vmem:[%s1430 + $0xcc] sm:$0xf] %v1533
                %v1535 = vld [vmem:[%s1429 + $0xd0] sm:$0xf]
                %1536 = vst [vmem:[%s1430 + $0xd0] sm:$0xf] %v1535
                %v1537 = vld [vmem:[%s1429 + $0xd4] sm:$0xf]
                %1538 = vst [vmem:[%s1430 + $0xd4] sm:$0xf] %v1537
                %v1539 = vld [vmem:[%s1429 + $0xd8] sm:$0xf]
                %1540 = vst [vmem:[%s1430 + $0xd8] sm:$0xf] %v1539
                %v1541 = vld [vmem:[%s1429 + $0xdc] sm:$0xf]
                %1542 = vst [vmem:[%s1430 + $0xdc] sm:$0xf] %v1541
                %v1543 = vld [vmem:[%s1429 + $0xe0] sm:$0xf]
                %1544 = vst [vmem:[%s1430 + $0xe0] sm:$0xf] %v1543
                %v1545 = vld [vmem:[%s1429 + $0xe4] sm:$0xf]
                %1546 = vst [vmem:[%s1430 + $0xe4] sm:$0xf] %v1545
                %v1547 = vld [vmem:[%s1429 + $0xe8] sm:$0xf]
                %1548 = vst [vmem:[%s1430 + $0xe8] sm:$0xf] %v1547
                %v1549 = vld [vmem:[%s1429 + $0xec] sm:$0xf]
                %1550 = vst [vmem:[%s1430 + $0xec] sm:$0xf] %v1549
                %v1551 = vld [vmem:[%s1429 + $0xf0] sm:$0xf]
                %1552 = vst [vmem:[%s1430 + $0xf0] sm:$0xf] %v1551
                %v1553 = vld [vmem:[%s1429 + $0xf4] sm:$0xf]
                %1554 = vst [vmem:[%s1430 + $0xf4] sm:$0xf] %v1553
                %v1555 = vld [vmem:[%s1429 + $0xf8] sm:$0xf]
                %1556 = vst [vmem:[%s1430 + $0xf8] sm:$0xf] %v1555
                %v1557 = vld [vmem:[%s1429 + $0xfc] sm:$0xf]
                %1558 = vst [vmem:[%s1430 + $0xfc] sm:$0xf] %v1557
                %s1559 = sadd.s32 1, %s1428
                %p1560 = scmp.ge.s32.totalorder %s1559, %s1421
                %s1561 = scalar_select %p1560, 0, %s1559
                %s1562 = smul.u32 %s1561, 256
                %s1563 = smul.u32 %s1561, 256
                %s1564 = scalar_lea.vmem %s1401, %s1562 [#allocation4]
                %s1565 = scalar_lea.vmem %s1412, %s1563
              $region57: #{tpu_custom_call.1} parent=51 // loop_footer
                %s1425 = sadd.s32 %s1423, 1
              $region58: #{tpu_custom_call.1} parent=51 // loop_footer_branch
                %1422 = sbr.rel target = $region54
              $region59: #{tpu_custom_call.1} parent=51 // loop_exit
                _
              %s1566 = sshrl.u32 %s1408, 6
              %s1567 = sand.u32 %s1408, 63
              %s1568 = smul.u32 %s1566, 64
              %s1569 = smul.u32 4, %s1568
              %s1570 = scalar_lea.vmem %s1401, %s1569 [#allocation4]
              %s1571 = smul.u32 4, %s1568
              %s1572 = scalar_lea.vmem %s1412, %s1571
              // While loop
              $region60: #{tpu_custom_call.1} parent=51 // loop_pre_header
                _
              $region61: #{tpu_custom_call.1} parent=51 // loop_header
                %s1574 = sphi 0, %s1576
                %p1575 = scmp.ge.s32.totalorder %s1574, %s1567
                %s1579 = sphi 0, %s1586
                %s1580 = sphi %s1570, %s1589
                %s1581 = sphi %s1572, %s1590
              $region62: #{tpu_custom_call.1} parent=51 // loop_header_branch
                %1578 = sbr.rel (%p1575) target = $region66
              $region63: #{tpu_custom_call.1} parent=51 // loop_body
                %v1582 = vld [vmem:[%s1580] sm:$0xf]
                %1583 = vst [vmem:[%s1581] sm:$0xf] %v1582
                %s1584 = sadd.s32 1, %s1579
                %p1585 = scmp.ge.s32.totalorder %s1584, %s1567
                %s1586 = scalar_select %p1585, 0, %s1584
                %s1587 = smul.u32 %s1586, 4
                %s1588 = smul.u32 %s1586, 4
                %s1589 = scalar_lea.vmem %s1570, %s1587 [#allocation4]
                %s1590 = scalar_lea.vmem %s1572, %s1588
              $region64: #{tpu_custom_call.1} parent=51 // loop_footer
                %s1576 = sadd.s32 %s1574, 1
              $region65: #{tpu_custom_call.1} parent=51 // loop_footer_branch
                %1573 = sbr.rel target = $region61
              $region66: #{tpu_custom_call.1} parent=51 // loop_exit
                _
            $region52: #{tpu_custom_call.1} parent=43 // pred_fallthru
              _
          $region44: #{tpu_custom_call.1} parent=39 // pred_fallthru
            _
          %1764 = vnop
        $region40: #{tpu_custom_call.1} parent=31 // pred_fallthru
          _
      $region32: #{tpu_custom_call.1} parent=5 // pred_fallthru
        _
      %p1765 = scmp.le.s32.totalorder 2, %s12
      // Predicated region
      $region85: #{tpu_custom_call.1} parent=5 // pred_check
        %p1766 = pneg %p1765
      $region86: #{tpu_custom_call.1} parent=5 // pred_check_branch
        %1768 = sbr.rel (%p1766) target = $region88
      $region87: #{tpu_custom_call.1} parent=5 // pred_region
        %s1769 = ssub.s32 %s12, 2
        // Predicated region
        $region89: #{tpu_custom_call.1} parent=87 // pred_check
          %p1770 = pneg %p109
        $region90: #{tpu_custom_call.1} parent=87 // pred_check_branch
          %1772 = sbr.rel (%p1770) target = $region92
        $region91: #{tpu_custom_call.1} parent=87 // pred_region
          %s1773 = sand.u32 %s94, 1
          %s1774 = sand.u32 %s94, 1
          %s1775 = smul.addr %s1774, 256
          %s1776 = scalar_lea.vmem [#allocation4], %s1775
        $region92: #{tpu_custom_call.1} parent=87 // pred_fallthru
          _
      $region88: #{tpu_custom_call.1} parent=5 // pred_fallthru
        _
    $region6: #{tpu_custom_call.1} parent=1 // loop_footer
      %s16 = sadd.s32 1, %s12
    $region7: #{tpu_custom_call.1} parent=1 // loop_footer_branch
      %11 = sbr.rel target = $region3
    $region8: #{tpu_custom_call.1} parent=1 // loop_exit
      _
    %1777 = vsyncpa [#allocation3], 1
    %s1778 = scalar_lea.sflag [#allocation3], 1
    %1779 = vsyncpa %s1778, 1

</llo_original>
